<compile_context>
chip_gen: v7x
topology: tpu7x:2x2x1
jax: 0.10.0
libtpu: 0.0.40
codegen_flags: <defaults>
</compile_context>

<pallas_src>
import jax
import jax.numpy as jnp
import numpy as np
from jax.experimental import pallas as pl
from jax.experimental.pallas import tpu as pltpu


def _round_up(v, m):
    return ((v + m - 1) // m) * m


# Tap order t = 3*(dh+1) + (dw+1); must match _stack_conv_weights().
_TAPS = tuple((dh, dw) for dh in (-1, 0, 1) for dw in (-1, 0, 1))


# ----------------------------- fused Pallas kernel -----------------------------

def _make_eca_block_kernel(NB, C, Cp, H, W, lpad, rpad, cdtype):
    """Fused ECABasicBlock kernel over NB images in (C, H*W) layout per step."""
    HW = H * W

    def kernel(x_ref, mask_ref, w1_ref, b1_ref, w2_ref, b2_ref, weca_ref,
               o_ref, xpad_ref, zpad_ref, win_ref, pbuf_ref):
        f32 = jnp.float32

        # --- per-step init: only the halo / pad regions (interiors are fully
        # rewritten every image).  Re-done every step (not just step 0) so the
        # kernel stays correct if the parallel grid axis is split over cores.
        zl = jnp.zeros((C, lpad), cdtype)
        zr = jnp.zeros((C, rpad), cdtype)
        xpad_ref[:, 0:lpad] = zl
        xpad_ref[:, lpad + HW:lpad + HW + rpad] = zr
        zpad_ref[:, 0:lpad] = zl
        zpad_ref[:, lpad + HW:lpad + HW + rpad] = zr
        pbuf_ref[...] = jnp.zeros_like(pbuf_ref)       # (C+2,1): edges must be 0
        if Cp != C:                                     # only when C % 8 != 0: pad
            win_ref[...] = jnp.zeros_like(win_ref)      # rows must not hold NaN junk

        # Grid-invariant column-edge keep masks (built once in the wrapper).
        keep_l = mask_ref[0]                            # (1, HW): w > 0
        keep_r = mask_ref[1]                            # (1, HW): w < W-1
        w_eca0 = weca_ref[0]
        w_eca1 = weca_ref[1]
        w_eca2 = weca_ref[2]

        def build_windows(src_ref):
            """Stack the 9 shifted 3x3 windows of src into win_ref (9*Cp, HW)."""
            # TODO(synk): generate the dh/dw shifts with pltpu.roll on the
            # in-register row window instead of 9 lane-misaligned VMEM slices
            # once the roll path is validated; slices are correct but ~2x VLD.
            for t, (dh, dw) in enumerate(_TAPS):
                s = lpad + dh * W + dw
                win = src_ref[:, s:s + HW]              # (C, HW)
                if dw == -1:
                    win = win * keep_l
                elif dw == 1:
                    win = win * keep_r
                win_ref[t * Cp:t * Cp + C, :] = win

        for b in range(NB):                             # static inner batch loop
            x_img = x_ref[b]                            # (C, HW) float32 residual

            # ---- conv1 (bn1 scale folded into weights) + bias + ReLU ----
            xpad_ref[:, lpad:lpad + HW] = x_img.astype(cdtype)
            build_windows(xpad_ref)
            z1 = jnp.dot(w1_ref[...], win_ref[...], preferred_element_type=f32)
            z1 = jnp.maximum(z1 + b1_ref[...], 0.0)

            # ---- conv2 (bn2 scale folded into weights) + bias ----
            zpad_ref[:, lpad:lpad + HW] = z1.astype(cdtype)
            build_windows(zpad_ref)
            z2 = jnp.dot(w2_ref[...], win_ref[...], preferred_element_type=f32)
            z2 = z2 + b2_ref[...]

            # ---- ECA: global average pool + 3-tap channel conv + sigmoid ----
            p = jnp.mean(z2, axis=1, keepdims=True)     # (C, 1) f32
            pbuf_ref[1:C + 1, :] = p                    # zero-padded channel axis
            y = (w_eca0 * pbuf_ref[0:C, :]              # p[c-1]
                 + w_eca1 * p                           # p[c]
                 + w_eca2 * pbuf_ref[2:C + 2, :])       # p[c+1]
            gate = jax.nn.sigmoid(y)                    # (C, 1)

            # ---- gate * bn2-out + residual (f32) + final ReLU ----
            out = z2 * gate + x_img
            o_ref[b] = jnp.maximum(out, 0.0).astype(o_ref.dtype)

    return kernel


# --------------------------------- JAX glue ---------------------------------

def _fold_bn(bn, eps=1e-5):
    """Inference BatchNorm -> per-channel scale / bias."""
    s = bn["gamma"] / jnp.sqrt(bn["var"] + eps)
    return s, bn["beta"] - bn["mean"] * s


def _stack_conv_weights(w, scale, Cp, dtype):
    """(Cout, Cin, 3, 3) conv weight * per-Cout BN scale -> (Cout, 9*Cp) matrix.

    Tap block t = 3*(dh+1) + (dw+1) occupies columns [t*Cp, t*Cp + Cin); the
    (Cp - Cin) pad columns stay zero so the sublane-aligned window stack needs
    no compaction in the kernel.
    """
    Cout, Cin, _, _ = w.shape
    taps = jnp.transpose(w, (2, 3, 0, 1)).reshape(9, Cout, Cin) * scale[None, :, None]
    wst = jnp.zeros((Cout, 9 * Cp), jnp.float32)
    for t in range(9):
        wst = wst.at[:, t * Cp:t * Cp + Cin].set(taps[t])
    return wst.astype(dtype)


def eca_basic_block(x, params, *, matmul_dtype=jnp.float32, out_dtype=None,
                    images_per_step=None):
    """Forward pass of ECABasicBlock (stride=1, no downsample). x: (N, C, H, W)."""
    N, C, H, W = x.shape
    HW = H * W
    # TODO(synk): for H*W not a multiple of 128 (e.g. 14x14, 7x7), pad the
    # flattened lane axis of output / scratch to 128 and strip in the wrapper.
    assert HW % 128 == 0, "flattened spatial axis must be lane-dense (x128)"

    out_dtype = x.dtype if out_dtype is None else out_dtype
    if images_per_step is None:
        images_per_step = next(nb for nb in (8, 4, 2, 1) if N % nb == 0)
    NB = images_per_step
    assert N % NB == 0

    Cp = _round_up(C, 8)             # sublane-aligned tap stride in window stack
    lpad = _round_up(2 * W, 128)     # left zero halo: >= W+1, lane-aligned interior
    rpad = 2 * W                     # right zero halo: >= W+1
    P = lpad + HW + rpad

    s1, b1 = _fold_bn(params["bn1"])
    s2, b2 = _fold_bn(params["bn2"])
    w1s = _stack_conv_weights(params["w1"], s1, Cp, matmul_dtype)   # (C, 9*Cp)
    w2s = _stack_conv_weights(params["w2"], s2, Cp, matmul_dtype)
    b1c = b1.reshape(C, 1).astype(jnp.float32)
    b2c = b2.reshape(C, 1).astype(jnp.float32)
    weca = params["w_eca"].astype(jnp.float32)                      # (3,) scalars

    # Grid-invariant column-edge keep masks for the dw = -1 / +1 taps.
    col = jnp.arange(HW, dtype=jnp.int32) % W
    colmask = jnp.stack([col > 0, col < W - 1]).astype(matmul_dtype).reshape(2, 1, HW)

    # NCHW -> (N, C, H*W): pure reshape, no transpose, no pad, stays float32
    # so the residual add keeps full precision even in the bf16 matmul path.
    x_flat = x.reshape(N, C, HW)

    kernel = _make_eca_block_kernel(NB, C, Cp, H, W, lpad, rpad, matmul_dtype)

    out = pl.pallas_call(
        kernel,
        out_shape=jax.ShapeDtypeStruct((N, C, HW), out_dtype),
        grid=(N // NB,),
        in_specs=[
            pl.BlockSpec((NB, C, HW), lambda g: (g, 0, 0)),        # input tile (f32)
            pl.BlockSpec((2, 1, HW), lambda g: (0, 0, 0)),         # column-edge masks
            pl.BlockSpec((C, 9 * Cp), lambda g: (0, 0)),           # conv1 taps (bn1 folded)
            pl.BlockSpec((C, 1), lambda g: (0, 0)),                # bn1 bias
            pl.BlockSpec((C, 9 * Cp), lambda g: (0, 0)),           # conv2 taps (bn2 folded)
            pl.BlockSpec((C, 1), lambda g: (0, 0)),                # bn2 bias
            pl.BlockSpec(memory_space=pltpu.MemorySpace.SMEM),     # ECA taps (3 scalars)
        ],
        out_specs=pl.BlockSpec((NB, C, HW), lambda g: (g, 0, 0)),
        scratch_shapes=[
            pltpu.VMEM((C, P), matmul_dtype),        # zero-haloed conv1 source
            pltpu.VMEM((C, P), matmul_dtype),        # zero-haloed conv2 source
            pltpu.VMEM((9 * Cp, HW), matmul_dtype),  # sublane-stacked window stack
            pltpu.VMEM((C + 2, 1), jnp.float32),     # zero-padded pooled vector (ECA)
        ],
        compiler_params=pltpu.CompilerParams(
            dimension_semantics=("parallel",)),
    )(x_flat, colmask, w1s, b1c, w2s, b2c, weca)

    return out.reshape(N, C, H, W)   # pure reshape back to NCHW


# --------------------------- pure-JAX reference -----------------------------

def ref_forward(x, params, eps=1e-5):
    hi = jax.lax.Precision.HIGHEST

    def conv3x3(inp, w):
        return jax.lax.conv_general_dilated(
            inp, w, (1, 1), ((1, 1), (1, 1)),
            dimension_numbers=("NCHW", "OIHW", "NCHW"), precision=hi)

    def bn(inp, b):
        s = b["gamma"] / jnp.sqrt(b["var"] + eps)
        return inp * s[None, :, None, None] + (b["beta"] - b["mean"] * s)[None, :, None, None]

    out = jax.nn.relu(bn(conv3x3(x, params["w1"]), params["bn1"]))
    out = bn(conv3x3(out, params["w2"]), params["bn2"])
    # ECA
    p = out.mean(axis=(2, 3))                               # (N, C)
    pp = jnp.pad(p, ((0, 0), (1, 1)))
    w = params["w_eca"]
    y = w[0] * pp[:, :-2] + w[1] * pp[:, 1:-1] + w[2] * pp[:, 2:]
    gate = jax.nn.sigmoid(y)
    return jax.nn.relu(out * gate[:, :, None, None] + x)


# ----------------------------------- main -----------------------------------

if __name__ == "__main__":
    key = jax.random.PRNGKey(0)
    N, C, H, W = 2, 4, 16, 16   # inplanes == planes == 4, stride == 1, no downsample
    ks = jax.random.split(key, 12)

    x = jax.random.normal(ks[0], (N, C, H, W), jnp.float32)

    def make_bn(k0, k1, k2, k3):
        return dict(
            gamma=1.0 + 0.1 * jax.random.normal(k0, (C,), jnp.float32),
            beta=0.1 * jax.random.normal(k1, (C,), jnp.float32),
            mean=0.1 * jax.random.normal(k2, (C,), jnp.float32),
            var=0.5 + jax.random.uniform(k3, (C,), jnp.float32),
        )

    params = dict(
        w1=0.2 * jax.random.normal(ks[1], (C, C, 3, 3), jnp.float32),
        w2=0.2 * jax.random.normal(ks[2], (C, C, 3, 3), jnp.float32),
        bn1=make_bn(ks[3], ks[4], ks[5], ks[6]),
        bn2=make_bn(ks[7], ks[8], ks[9], ks[10]),
        w_eca=0.5 * jax.random.normal(ks[11], (3,), jnp.float32),
    )

    ref = ref_forward(x, params)

    # f32 matmul operands + f32 output: tight numerical check.
    out = jax.block_until_ready(eca_basic_block(x, params, matmul_dtype=jnp.float32))
    np.testing.assert_allclose(np.asarray(out), np.asarray(ref), rtol=1e-3, atol=1e-3)

    # bf16 matmul operands + bf16 output (halved HBM traffic at real sizes): loose check.
    out_bf16 = jax.block_until_ready(
        eca_basic_block(x, params, matmul_dtype=jnp.bfloat16, out_dtype=jnp.bfloat16))
    np.testing.assert_allclose(np.asarray(out_bf16.astype(jnp.float32)),
                               np.asarray(ref), rtol=5e-2, atol=5e-2)

    print("KERNEL_OK")
</pallas_src>

<mosaic_0001>
module attributes {stable_mosaic.version = 11 : i64} {
  func.func @kernel(%arg0: i32, %arg1: memref<2x4x256xf32, #tpu.memory_space<vmem>>, %arg2: memref<2x1x256xf32, #tpu.memory_space<vmem>>, %arg3: memref<4x72xf32, #tpu.memory_space<vmem>>, %arg4: memref<4x1xf32, #tpu.memory_space<vmem>>, %arg5: memref<4x72xf32, #tpu.memory_space<vmem>>, %arg6: memref<4x1xf32, #tpu.memory_space<vmem>>, %arg7: memref<3xf32, #tpu.memory_space<smem>>, %arg8: memref<2x4x256xf32, #tpu.memory_space<vmem>>, %arg9: memref<4x416xf32, #tpu.memory_space<vmem>>, %arg10: memref<4x416xf32, #tpu.memory_space<vmem>>, %arg11: memref<72x256xf32, #tpu.memory_space<vmem>>, %arg12: memref<6x1xf32, #tpu.memory_space<vmem>>) attributes {dimension_semantics = [#tpu.dimension_semantics<parallel>], iteration_bounds = array<i64: 1>, scalar_prefetch = 0 : i64, scratch_operands = 4 : i64, tpu.core_type = #tpu.core_type<tc>, window_params = [{transform_indices = @transform_0, window_bounds = array<i64: 2, 4, 256>}, {pipeline_mode = #tpu.pipeline_mode<synchronous>, transform_indices = @transform_1, window_bounds = array<i64: 2, 1, 256>}, {pipeline_mode = #tpu.pipeline_mode<synchronous>, transform_indices = @transform_2, window_bounds = array<i64: 4, 72>}, {pipeline_mode = #tpu.pipeline_mode<synchronous>, transform_indices = @transform_3, window_bounds = array<i64: 4, 1>}, {pipeline_mode = #tpu.pipeline_mode<synchronous>, transform_indices = @transform_4, window_bounds = array<i64: 4, 72>}, {pipeline_mode = #tpu.pipeline_mode<synchronous>, transform_indices = @transform_5, window_bounds = array<i64: 4, 1>}, {transform_indices = @transform_6, window_bounds = array<i64: 3>}, {transform_indices = @transform_7, window_bounds = array<i64: 2, 4, 256>}]} {
    %cst = arith.constant 0.000000e+00 : f32
    %0 = vector.broadcast %cst : f32 to vector<4x128xf32>
    %cst_0 = arith.constant 0.000000e+00 : f32
    %1 = vector.broadcast %cst_0 : f32 to vector<4x32xf32>
    %c0 = arith.constant 0 : index
    %c0_1 = arith.constant 0 : index
    %2 = vector.load %arg9[%c0, %c0_1] : memref<4x416xf32, #tpu.memory_space<vmem>>, vector<4x128xf32>
    tpu.vector_store %arg9[%c0, %c0_1], %0 {strides = array<i32>} : memref<4x416xf32, #tpu.memory_space<vmem>>, vector<4x128xf32>,
    %c0_2 = arith.constant 0 : index
    %c384 = arith.constant 384 : index
    %3 = vector.load %arg9[%c0_2, %c384] : memref<4x416xf32, #tpu.memory_space<vmem>>, vector<4x32xf32>
    tpu.vector_store %arg9[%c0_2, %c384], %1 {strides = array<i32>} : memref<4x416xf32, #tpu.memory_space<vmem>>, vector<4x32xf32>,
    %c0_3 = arith.constant 0 : index
    %c0_4 = arith.constant 0 : index
    %4 = vector.load %arg10[%c0_3, %c0_4] : memref<4x416xf32, #tpu.memory_space<vmem>>, vector<4x128xf32>
    tpu.vector_store %arg10[%c0_3, %c0_4], %0 {strides = array<i32>} : memref<4x416xf32, #tpu.memory_space<vmem>>, vector<4x128xf32>,
    %c0_5 = arith.constant 0 : index
    %c384_6 = arith.constant 384 : index
    %5 = vector.load %arg10[%c0_5, %c384_6] : memref<4x416xf32, #tpu.memory_space<vmem>>, vector<4x32xf32>
    tpu.vector_store %arg10[%c0_5, %c384_6], %1 {strides = array<i32>} : memref<4x416xf32, #tpu.memory_space<vmem>>, vector<4x32xf32>,
    %cst_7 = arith.constant 0.000000e+00 : f32
    %6 = vector.broadcast %cst_7 : f32 to vector<6x1xf32>
    %c0_8 = arith.constant 0 : index
    %c0_9 = arith.constant 0 : index
    %7 = vector.load %arg12[%c0_8, %c0_9] : memref<6x1xf32, #tpu.memory_space<vmem>>, vector<6x1xf32>
    tpu.vector_store %arg12[%c0_8, %c0_9], %6 {strides = array<i32>} : memref<6x1xf32, #tpu.memory_space<vmem>>, vector<6x1xf32>,
    %cst_10 = arith.constant 0.000000e+00 : f32
    %8 = vector.broadcast %cst_10 : f32 to vector<72x256xf32>
    %c0_11 = arith.constant 0 : index
    %c0_12 = arith.constant 0 : index
    %9 = vector.load %arg11[%c0_11, %c0_12] : memref<72x256xf32, #tpu.memory_space<vmem>>, vector<72x256xf32>
    tpu.vector_store %arg11[%c0_11, %c0_12], %8 {strides = array<i32>} : memref<72x256xf32, #tpu.memory_space<vmem>>, vector<72x256xf32>,
    %c0_13 = arith.constant 0 : index
    %c0_14 = arith.constant 0 : index
    %c0_15 = arith.constant 0 : index
    %10 = vector.load %arg2[%c0_13, %c0_14, %c0_15] : memref<2x1x256xf32, #tpu.memory_space<vmem>>, vector<1x1x256xf32>
    %11 = vector.shape_cast %10 : vector<1x1x256xf32> to vector<1x256xf32>
    %c1 = arith.constant 1 : index
    %c0_16 = arith.constant 0 : index
    %c0_17 = arith.constant 0 : index
    %12 = vector.load %arg2[%c1, %c0_16, %c0_17] : memref<2x1x256xf32, #tpu.memory_space<vmem>>, vector<1x1x256xf32>
    %13 = vector.shape_cast %12 : vector<1x1x256xf32> to vector<1x256xf32>
    %c0_18 = arith.constant 0 : index
    %14 = memref.load %arg7[%c0_18] : memref<3xf32, #tpu.memory_space<smem>>
    %c1_19 = arith.constant 1 : index
    %15 = memref.load %arg7[%c1_19] : memref<3xf32, #tpu.memory_space<smem>>
    %c2 = arith.constant 2 : index
    %16 = memref.load %arg7[%c2] : memref<3xf32, #tpu.memory_space<smem>>
    %c0_20 = arith.constant 0 : index
    %c0_21 = arith.constant 0 : index
    %c0_22 = arith.constant 0 : index
    %17 = vector.load %arg1[%c0_20, %c0_21, %c0_22] : memref<2x4x256xf32, #tpu.memory_space<vmem>>, vector<1x4x256xf32>
    %18 = vector.shape_cast %17 : vector<1x4x256xf32> to vector<4x256xf32>
    %c0_23 = arith.constant 0 : index
    %c128 = arith.constant 128 : index
    %19 = vector.load %arg9[%c0_23, %c128] : memref<4x416xf32, #tpu.memory_space<vmem>>, vector<4x256xf32>
    tpu.vector_store %arg9[%c0_23, %c128], %18 {strides = array<i32>} : memref<4x416xf32, #tpu.memory_space<vmem>>, vector<4x256xf32>,
    %c0_24 = arith.constant 0 : index
    %c111 = arith.constant 111 : index
    %20 = vector.load %arg9[%c0_24, %c111] : memref<4x416xf32, #tpu.memory_space<vmem>>, vector<4x256xf32>
    %21 = vector.broadcast %11 : vector<1x256xf32> to vector<4x256xf32>
    %22 = arith.mulf %20, %21 : vector<4x256xf32>
    %c0_25 = arith.constant 0 : index
    %c0_26 = arith.constant 0 : index
    %23 = vector.load %arg11[%c0_25, %c0_26] : memref<72x256xf32, #tpu.memory_space<vmem>>, vector<4x256xf32>
    tpu.vector_store %arg11[%c0_25, %c0_26], %22 {strides = array<i32>} : memref<72x256xf32, #tpu.memory_space<vmem>>, vector<4x256xf32>,
    %c0_27 = arith.constant 0 : index
    %c112 = arith.constant 112 : index
    %24 = vector.load %arg9[%c0_27, %c112] : memref<4x416xf32, #tpu.memory_space<vmem>>, vector<4x256xf32>
    %c8 = arith.constant 8 : index
    %c0_28 = arith.constant 0 : index
    %25 = vector.load %arg11[%c8, %c0_28] : memref<72x256xf32, #tpu.memory_space<vmem>>, vector<4x256xf32>
    tpu.vector_store %arg11[%c8, %c0_28], %24 {strides = array<i32>} : memref<72x256xf32, #tpu.memory_space<vmem>>, vector<4x256xf32>,
    %c0_29 = arith.constant 0 : index
    %c113 = arith.constant 113 : index
    %26 = vector.load %arg9[%c0_29, %c113] : memref<4x416xf32, #tpu.memory_space<vmem>>, vector<4x256xf32>
    %27 = vector.broadcast %13 : vector<1x256xf32> to vector<4x256xf32>
    %28 = arith.mulf %26, %27 : vector<4x256xf32>
    %c16 = arith.constant 16 : index
    %c0_30 = arith.constant 0 : index
    %29 = vector.load %arg11[%c16, %c0_30] : memref<72x256xf32, #tpu.memory_space<vmem>>, vector<4x256xf32>
    tpu.vector_store %arg11[%c16, %c0_30], %28 {strides = array<i32>} : memref<72x256xf32, #tpu.memory_space<vmem>>, vector<4x256xf32>,
    %c0_31 = arith.constant 0 : index
    %c127 = arith.constant 127 : index
    %30 = vector.load %arg9[%c0_31, %c127] : memref<4x416xf32, #tpu.memory_space<vmem>>, vector<4x256xf32>
    %31 = vector.broadcast %11 : vector<1x256xf32> to vector<4x256xf32>
    %32 = arith.mulf %30, %31 : vector<4x256xf32>
    %c24 = arith.constant 24 : index
    %c0_32 = arith.constant 0 : index
    %33 = vector.load %arg11[%c24, %c0_32] : memref<72x256xf32, #tpu.memory_space<vmem>>, vector<4x256xf32>
    tpu.vector_store %arg11[%c24, %c0_32], %32 {strides = array<i32>} : memref<72x256xf32, #tpu.memory_space<vmem>>, vector<4x256xf32>,
    %c0_33 = arith.constant 0 : index
    %c128_34 = arith.constant 128 : index
    %34 = vector.load %arg9[%c0_33, %c128_34] : memref<4x416xf32, #tpu.memory_space<vmem>>, vector<4x256xf32>
    %c32 = arith.constant 32 : index
    %c0_35 = arith.constant 0 : index
    %35 = vector.load %arg11[%c32, %c0_35] : memref<72x256xf32, #tpu.memory_space<vmem>>, vector<4x256xf32>
    tpu.vector_store %arg11[%c32, %c0_35], %34 {strides = array<i32>} : memref<72x256xf32, #tpu.memory_space<vmem>>, vector<4x256xf32>,
    %c0_36 = arith.constant 0 : index
    %c129 = arith.constant 129 : index
    %36 = vector.load %arg9[%c0_36, %c129] : memref<4x416xf32, #tpu.memory_space<vmem>>, vector<4x256xf32>
    %37 = vector.broadcast %13 : vector<1x256xf32> to vector<4x256xf32>
    %38 = arith.mulf %36, %37 : vector<4x256xf32>
    %c40 = arith.constant 40 : index
    %c0_37 = arith.constant 0 : index
    %39 = vector.load %arg11[%c40, %c0_37] : memref<72x256xf32, #tpu.memory_space<vmem>>, vector<4x256xf32>
    tpu.vector_store %arg11[%c40, %c0_37], %38 {strides = array<i32>} : memref<72x256xf32, #tpu.memory_space<vmem>>, vector<4x256xf32>,
    %c0_38 = arith.constant 0 : index
    %c143 = arith.constant 143 : index
    %40 = vector.load %arg9[%c0_38, %c143] : memref<4x416xf32, #tpu.memory_space<vmem>>, vector<4x256xf32>
    %41 = vector.broadcast %11 : vector<1x256xf32> to vector<4x256xf32>
    %42 = arith.mulf %40, %41 : vector<4x256xf32>
    %c48 = arith.constant 48 : index
    %c0_39 = arith.constant 0 : index
    %43 = vector.load %arg11[%c48, %c0_39] : memref<72x256xf32, #tpu.memory_space<vmem>>, vector<4x256xf32>
    tpu.vector_store %arg11[%c48, %c0_39], %42 {strides = array<i32>} : memref<72x256xf32, #tpu.memory_space<vmem>>, vector<4x256xf32>,
    %c0_40 = arith.constant 0 : index
    %c144 = arith.constant 144 : index
    %44 = vector.load %arg9[%c0_40, %c144] : memref<4x416xf32, #tpu.memory_space<vmem>>, vector<4x256xf32>
    %c56 = arith.constant 56 : index
    %c0_41 = arith.constant 0 : index
    %45 = vector.load %arg11[%c56, %c0_41] : memref<72x256xf32, #tpu.memory_space<vmem>>, vector<4x256xf32>
    tpu.vector_store %arg11[%c56, %c0_41], %44 {strides = array<i32>} : memref<72x256xf32, #tpu.memory_space<vmem>>, vector<4x256xf32>,
    %c0_42 = arith.constant 0 : index
    %c145 = arith.constant 145 : index
    %46 = vector.load %arg9[%c0_42, %c145] : memref<4x416xf32, #tpu.memory_space<vmem>>, vector<4x256xf32>
    %47 = vector.broadcast %13 : vector<1x256xf32> to vector<4x256xf32>
    %48 = arith.mulf %46, %47 : vector<4x256xf32>
    %c64 = arith.constant 64 : index
    %c0_43 = arith.constant 0 : index
    %49 = vector.load %arg11[%c64, %c0_43] : memref<72x256xf32, #tpu.memory_space<vmem>>, vector<4x256xf32>
    tpu.vector_store %arg11[%c64, %c0_43], %48 {strides = array<i32>} : memref<72x256xf32, #tpu.memory_space<vmem>>, vector<4x256xf32>,
    %c0_44 = arith.constant 0 : index
    %c0_45 = arith.constant 0 : index
    %50 = vector.load %arg3[%c0_44, %c0_45] : memref<4x72xf32, #tpu.memory_space<vmem>>, vector<4x72xf32>
    %c0_46 = arith.constant 0 : index
    %c0_47 = arith.constant 0 : index
    %51 = vector.load %arg11[%c0_46, %c0_47] : memref<72x256xf32, #tpu.memory_space<vmem>>, vector<72x256xf32>
    %cst_48 = arith.constant dense<0.000000e+00> : vector<4x256xf32>
    %52 = tpu.matmul %50, %51, %cst_48 {dimension_numbers = #tpu.dot_dimension_numbers<[1], [0], [0], [1], [0, 0, 1, 1], [], []>} : vector<4x72xf32>, vector<72x256xf32>, vector<4x256xf32> -> vector<4x256xf32>
    %c0_49 = arith.constant 0 : index
    %c0_50 = arith.constant 0 : index
    %53 = vector.load %arg4[%c0_49, %c0_50] : memref<4x1xf32, #tpu.memory_space<vmem>>, vector<4x1xf32>
    %54 = vector.broadcast %53 : vector<4x1xf32> to vector<4x256xf32>
    %55 = arith.addf %52, %54 : vector<4x256xf32>
    %cst_51 = arith.constant 0.000000e+00 : f32
    %56 = vector.broadcast %cst_51 : f32 to vector<4x256xf32>
    %57 = arith.maximumf %55, %56 : vector<4x256xf32>
    %c0_52 = arith.constant 0 : index
    %c128_53 = arith.constant 128 : index
    %58 = vector.load %arg10[%c0_52, %c128_53] : memref<4x416xf32, #tpu.memory_space<vmem>>, vector<4x256xf32>
    tpu.vector_store %arg10[%c0_52, %c128_53], %57 {strides = array<i32>} : memref<4x416xf32, #tpu.memory_space<vmem>>, vector<4x256xf32>,
    %c0_54 = arith.constant 0 : index
    %c111_55 = arith.constant 111 : index
    %59 = vector.load %arg10[%c0_54, %c111_55] : memref<4x416xf32, #tpu.memory_space<vmem>>, vector<4x256xf32>
    %60 = vector.broadcast %11 : vector<1x256xf32> to vector<4x256xf32>
    %61 = arith.mulf %59, %60 : vector<4x256xf32>
    %c0_56 = arith.constant 0 : index
    %c0_57 = arith.constant 0 : index
    %62 = vector.load %arg11[%c0_56, %c0_57] : memref<72x256xf32, #tpu.memory_space<vmem>>, vector<4x256xf32>
    tpu.vector_store %arg11[%c0_56, %c0_57], %61 {strides = array<i32>} : memref<72x256xf32, #tpu.memory_space<vmem>>, vector<4x256xf32>,
    %c0_58 = arith.constant 0 : index
    %c112_59 = arith.constant 112 : index
    %63 = vector.load %arg10[%c0_58, %c112_59] : memref<4x416xf32, #tpu.memory_space<vmem>>, vector<4x256xf32>
    %c8_60 = arith.constant 8 : index
    %c0_61 = arith.constant 0 : index
    %64 = vector.load %arg11[%c8_60, %c0_61] : memref<72x256xf32, #tpu.memory_space<vmem>>, vector<4x256xf32>
    tpu.vector_store %arg11[%c8_60, %c0_61], %63 {strides = array<i32>} : memref<72x256xf32, #tpu.memory_space<vmem>>, vector<4x256xf32>,
    %c0_62 = arith.constant 0 : index
    %c113_63 = arith.constant 113 : index
    %65 = vector.load %arg10[%c0_62, %c113_63] : memref<4x416xf32, #tpu.memory_space<vmem>>, vector<4x256xf32>
    %66 = vector.broadcast %13 : vector<1x256xf32> to vector<4x256xf32>
    %67 = arith.mulf %65, %66 : vector<4x256xf32>
    %c16_64 = arith.constant 16 : index
    %c0_65 = arith.constant 0 : index
    %68 = vector.load %arg11[%c16_64, %c0_65] : memref<72x256xf32, #tpu.memory_space<vmem>>, vector<4x256xf32>
    tpu.vector_store %arg11[%c16_64, %c0_65], %67 {strides = array<i32>} : memref<72x256xf32, #tpu.memory_space<vmem>>, vector<4x256xf32>,
    %c0_66 = arith.constant 0 : index
    %c127_67 = arith.constant 127 : index
    %69 = vector.load %arg10[%c0_66, %c127_67] : memref<4x416xf32, #tpu.memory_space<vmem>>, vector<4x256xf32>
    %70 = vector.broadcast %11 : vector<1x256xf32> to vector<4x256xf32>
    %71 = arith.mulf %69, %70 : vector<4x256xf32>
    %c24_68 = arith.constant 24 : index
    %c0_69 = arith.constant 0 : index
    %72 = vector.load %arg11[%c24_68, %c0_69] : memref<72x256xf32, #tpu.memory_space<vmem>>, vector<4x256xf32>
    tpu.vector_store %arg11[%c24_68, %c0_69], %71 {strides = array<i32>} : memref<72x256xf32, #tpu.memory_space<vmem>>, vector<4x256xf32>,
    %c0_70 = arith.constant 0 : index
    %c128_71 = arith.constant 128 : index
    %73 = vector.load %arg10[%c0_70, %c128_71] : memref<4x416xf32, #tpu.memory_space<vmem>>, vector<4x256xf32>
    %c32_72 = arith.constant 32 : index
    %c0_73 = arith.constant 0 : index
    %74 = vector.load %arg11[%c32_72, %c0_73] : memref<72x256xf32, #tpu.memory_space<vmem>>, vector<4x256xf32>
    tpu.vector_store %arg11[%c32_72, %c0_73], %73 {strides = array<i32>} : memref<72x256xf32, #tpu.memory_space<vmem>>, vector<4x256xf32>,
    %c0_74 = arith.constant 0 : index
    %c129_75 = arith.constant 129 : index
    %75 = vector.load %arg10[%c0_74, %c129_75] : memref<4x416xf32, #tpu.memory_space<vmem>>, vector<4x256xf32>
    %76 = vector.broadcast %13 : vector<1x256xf32> to vector<4x256xf32>
    %77 = arith.mulf %75, %76 : vector<4x256xf32>
    %c40_76 = arith.constant 40 : index
    %c0_77 = arith.constant 0 : index
    %78 = vector.load %arg11[%c40_76, %c0_77] : memref<72x256xf32, #tpu.memory_space<vmem>>, vector<4x256xf32>
    tpu.vector_store %arg11[%c40_76, %c0_77], %77 {strides = array<i32>} : memref<72x256xf32, #tpu.memory_space<vmem>>, vector<4x256xf32>,
    %c0_78 = arith.constant 0 : index
    %c143_79 = arith.constant 143 : index
    %79 = vector.load %arg10[%c0_78, %c143_79] : memref<4x416xf32, #tpu.memory_space<vmem>>, vector<4x256xf32>
    %80 = vector.broadcast %11 : vector<1x256xf32> to vector<4x256xf32>
    %81 = arith.mulf %79, %80 : vector<4x256xf32>
    %c48_80 = arith.constant 48 : index
    %c0_81 = arith.constant 0 : index
    %82 = vector.load %arg11[%c48_80, %c0_81] : memref<72x256xf32, #tpu.memory_space<vmem>>, vector<4x256xf32>
    tpu.vector_store %arg11[%c48_80, %c0_81], %81 {strides = array<i32>} : memref<72x256xf32, #tpu.memory_space<vmem>>, vector<4x256xf32>,
    %c0_82 = arith.constant 0 : index
    %c144_83 = arith.constant 144 : index
    %83 = vector.load %arg10[%c0_82, %c144_83] : memref<4x416xf32, #tpu.memory_space<vmem>>, vector<4x256xf32>
    %c56_84 = arith.constant 56 : index
    %c0_85 = arith.constant 0 : index
    %84 = vector.load %arg11[%c56_84, %c0_85] : memref<72x256xf32, #tpu.memory_space<vmem>>, vector<4x256xf32>
    tpu.vector_store %arg11[%c56_84, %c0_85], %83 {strides = array<i32>} : memref<72x256xf32, #tpu.memory_space<vmem>>, vector<4x256xf32>,
    %c0_86 = arith.constant 0 : index
    %c145_87 = arith.constant 145 : index
    %85 = vector.load %arg10[%c0_86, %c145_87] : memref<4x416xf32, #tpu.memory_space<vmem>>, vector<4x256xf32>
    %86 = vector.broadcast %13 : vector<1x256xf32> to vector<4x256xf32>
    %87 = arith.mulf %85, %86 : vector<4x256xf32>
    %c64_88 = arith.constant 64 : index
    %c0_89 = arith.constant 0 : index
    %88 = vector.load %arg11[%c64_88, %c0_89] : memref<72x256xf32, #tpu.memory_space<vmem>>, vector<4x256xf32>
    tpu.vector_store %arg11[%c64_88, %c0_89], %87 {strides = array<i32>} : memref<72x256xf32, #tpu.memory_space<vmem>>, vector<4x256xf32>,
    %c0_90 = arith.constant 0 : index
    %c0_91 = arith.constant 0 : index
    %89 = vector.load %arg5[%c0_90, %c0_91] : memref<4x72xf32, #tpu.memory_space<vmem>>, vector<4x72xf32>
    %c0_92 = arith.constant 0 : index
    %c0_93 = arith.constant 0 : index
    %90 = vector.load %arg11[%c0_92, %c0_93] : memref<72x256xf32, #tpu.memory_space<vmem>>, vector<72x256xf32>
    %cst_94 = arith.constant dense<0.000000e+00> : vector<4x256xf32>
    %91 = tpu.matmul %89, %90, %cst_94 {dimension_numbers = #tpu.dot_dimension_numbers<[1], [0], [0], [1], [0, 0, 1, 1], [], []>} : vector<4x72xf32>, vector<72x256xf32>, vector<4x256xf32> -> vector<4x256xf32>
    %c0_95 = arith.constant 0 : index
    %c0_96 = arith.constant 0 : index
    %92 = vector.load %arg6[%c0_95, %c0_96] : memref<4x1xf32, #tpu.memory_space<vmem>>, vector<4x1xf32>
    %93 = vector.broadcast %92 : vector<4x1xf32> to vector<4x256xf32>
    %94 = arith.addf %91, %93 : vector<4x256xf32>
    %cst_97 = arith.constant dense<0.000000e+00> : vector<4xf32>
    %95 = vector.multi_reduction <add>, %94, %cst_97 [1] : vector<4x256xf32> to vector<4xf32>
    %96 = vector.shape_cast %95 : vector<4xf32> to vector<4x1xf32>
    %cst_98 = arith.constant 2.560000e+02 : f32
    %97 = vector.broadcast %cst_98 : f32 to vector<4x1xf32>
    %98 = arith.divf %96, %97 : vector<4x1xf32>
    %c1_99 = arith.constant 1 : index
    %c0_100 = arith.constant 0 : index
    %99 = vector.load %arg12[%c1_99, %c0_100] : memref<6x1xf32, #tpu.memory_space<vmem>>, vector<4x1xf32>
    tpu.vector_store %arg12[%c1_99, %c0_100], %98 {strides = array<i32>} : memref<6x1xf32, #tpu.memory_space<vmem>>, vector<4x1xf32>,
    %c0_101 = arith.constant 0 : index
    %c0_102 = arith.constant 0 : index
    %100 = vector.load %arg12[%c0_101, %c0_102] : memref<6x1xf32, #tpu.memory_space<vmem>>, vector<4x1xf32>
    %101 = vector.broadcast %14 : f32 to vector<4x1xf32>
    %102 = arith.mulf %101, %100 : vector<4x1xf32>
    %103 = vector.broadcast %15 : f32 to vector<4x1xf32>
    %104 = arith.mulf %103, %98 : vector<4x1xf32>
    %105 = arith.addf %102, %104 : vector<4x1xf32>
    %c2_103 = arith.constant 2 : index
    %c0_104 = arith.constant 0 : index
    %106 = vector.load %arg12[%c2_103, %c0_104] : memref<6x1xf32, #tpu.memory_space<vmem>>, vector<4x1xf32>
    %107 = vector.broadcast %16 : f32 to vector<4x1xf32>
    %108 = arith.mulf %107, %106 : vector<4x1xf32>
    %109 = arith.addf %105, %108 : vector<4x1xf32>
    %110 = arith.negf %109 : vector<4x1xf32>
    %111 = math.exp %110 : vector<4x1xf32>
    %cst_105 = arith.constant 1.000000e+00 : f32
    %112 = vector.broadcast %cst_105 : f32 to vector<4x1xf32>
    %113 = arith.addf %112, %111 : vector<4x1xf32>
    %114 = arith.divf %112, %113 : vector<4x1xf32>
    %115 = vector.broadcast %114 : vector<4x1xf32> to vector<4x256xf32>
    %116 = arith.mulf %94, %115 : vector<4x256xf32>
    %117 = arith.addf %116, %18 : vector<4x256xf32>
    %cst_106 = arith.constant 0.000000e+00 : f32
    %118 = vector.broadcast %cst_106 : f32 to vector<4x256xf32>
    %119 = arith.maximumf %117, %118 : vector<4x256xf32>
    %c0_107 = arith.constant 0 : index
    %c0_108 = arith.constant 0 : index
    %c0_109 = arith.constant 0 : index
    %120 = vector.load %arg8[%c0_107, %c0_108, %c0_109] : memref<2x4x256xf32, #tpu.memory_space<vmem>>, vector<1x4x256xf32>
    %121 = vector.shape_cast %120 : vector<1x4x256xf32> to vector<4x256xf32>
    %122 = vector.shape_cast %119 : vector<4x256xf32> to vector<1x4x256xf32>
    tpu.vector_store %arg8[%c0_107, %c0_108, %c0_109], %122 {strides = array<i32>} : memref<2x4x256xf32, #tpu.memory_space<vmem>>, vector<1x4x256xf32>,
    %c1_110 = arith.constant 1 : index
    %c0_111 = arith.constant 0 : index
    %c0_112 = arith.constant 0 : index
    %123 = vector.load %arg1[%c1_110, %c0_111, %c0_112] : memref<2x4x256xf32, #tpu.memory_space<vmem>>, vector<1x4x256xf32>
    %124 = vector.shape_cast %123 : vector<1x4x256xf32> to vector<4x256xf32>
    %c0_113 = arith.constant 0 : index
    %c128_114 = arith.constant 128 : index
    %125 = vector.load %arg9[%c0_113, %c128_114] : memref<4x416xf32, #tpu.memory_space<vmem>>, vector<4x256xf32>
    tpu.vector_store %arg9[%c0_113, %c128_114], %124 {strides = array<i32>} : memref<4x416xf32, #tpu.memory_space<vmem>>, vector<4x256xf32>,
    %c0_115 = arith.constant 0 : index
    %c111_116 = arith.constant 111 : index
    %126 = vector.load %arg9[%c0_115, %c111_116] : memref<4x416xf32, #tpu.memory_space<vmem>>, vector<4x256xf32>
    %127 = vector.broadcast %11 : vector<1x256xf32> to vector<4x256xf32>
    %128 = arith.mulf %126, %127 : vector<4x256xf32>
    %c0_117 = arith.constant 0 : index
    %c0_118 = arith.constant 0 : index
    %129 = vector.load %arg11[%c0_117, %c0_118] : memref<72x256xf32, #tpu.memory_space<vmem>>, vector<4x256xf32>
    tpu.vector_store %arg11[%c0_117, %c0_118], %128 {strides = array<i32>} : memref<72x256xf32, #tpu.memory_space<vmem>>, vector<4x256xf32>,
    %c0_119 = arith.constant 0 : index
    %c112_120 = arith.constant 112 : index
    %130 = vector.load %arg9[%c0_119, %c112_120] : memref<4x416xf32, #tpu.memory_space<vmem>>, vector<4x256xf32>
    %c8_121 = arith.constant 8 : index
    %c0_122 = arith.constant 0 : index
    %131 = vector.load %arg11[%c8_121, %c0_122] : memref<72x256xf32, #tpu.memory_space<vmem>>, vector<4x256xf32>
    tpu.vector_store %arg11[%c8_121, %c0_122], %130 {strides = array<i32>} : memref<72x256xf32, #tpu.memory_space<vmem>>, vector<4x256xf32>,
    %c0_123 = arith.constant 0 : index
    %c113_124 = arith.constant 113 : index
    %132 = vector.load %arg9[%c0_123, %c113_124] : memref<4x416xf32, #tpu.memory_space<vmem>>, vector<4x256xf32>
    %133 = vector.broadcast %13 : vector<1x256xf32> to vector<4x256xf32>
    %134 = arith.mulf %132, %133 : vector<4x256xf32>
    %c16_125 = arith.constant 16 : index
    %c0_126 = arith.constant 0 : index
    %135 = vector.load %arg11[%c16_125, %c0_126] : memref<72x256xf32, #tpu.memory_space<vmem>>, vector<4x256xf32>
    tpu.vector_store %arg11[%c16_125, %c0_126], %134 {strides = array<i32>} : memref<72x256xf32, #tpu.memory_space<vmem>>, vector<4x256xf32>,
    %c0_127 = arith.constant 0 : index
    %c127_128 = arith.constant 127 : index
    %136 = vector.load %arg9[%c0_127, %c127_128] : memref<4x416xf32, #tpu.memory_space<vmem>>, vector<4x256xf32>
    %137 = vector.broadcast %11 : vector<1x256xf32> to vector<4x256xf32>
    %138 = arith.mulf %136, %137 : vector<4x256xf32>
    %c24_129 = arith.constant 24 : index
    %c0_130 = arith.constant 0 : index
    %139 = vector.load %arg11[%c24_129, %c0_130] : memref<72x256xf32, #tpu.memory_space<vmem>>, vector<4x256xf32>
    tpu.vector_store %arg11[%c24_129, %c0_130], %138 {strides = array<i32>} : memref<72x256xf32, #tpu.memory_space<vmem>>, vector<4x256xf32>,
    %c0_131 = arith.constant 0 : index
    %c128_132 = arith.constant 128 : index
    %140 = vector.load %arg9[%c0_131, %c128_132] : memref<4x416xf32, #tpu.memory_space<vmem>>, vector<4x256xf32>
    %c32_133 = arith.constant 32 : index
    %c0_134 = arith.constant 0 : index
    %141 = vector.load %arg11[%c32_133, %c0_134] : memref<72x256xf32, #tpu.memory_space<vmem>>, vector<4x256xf32>
    tpu.vector_store %arg11[%c32_133, %c0_134], %140 {strides = array<i32>} : memref<72x256xf32, #tpu.memory_space<vmem>>, vector<4x256xf32>,
    %c0_135 = arith.constant 0 : index
    %c129_136 = arith.constant 129 : index
    %142 = vector.load %arg9[%c0_135, %c129_136] : memref<4x416xf32, #tpu.memory_space<vmem>>, vector<4x256xf32>
    %143 = vector.broadcast %13 : vector<1x256xf32> to vector<4x256xf32>
    %144 = arith.mulf %142, %143 : vector<4x256xf32>
    %c40_137 = arith.constant 40 : index
    %c0_138 = arith.constant 0 : index
    %145 = vector.load %arg11[%c40_137, %c0_138] : memref<72x256xf32, #tpu.memory_space<vmem>>, vector<4x256xf32>
    tpu.vector_store %arg11[%c40_137, %c0_138], %144 {strides = array<i32>} : memref<72x256xf32, #tpu.memory_space<vmem>>, vector<4x256xf32>,
    %c0_139 = arith.constant 0 : index
    %c143_140 = arith.constant 143 : index
    %146 = vector.load %arg9[%c0_139, %c143_140] : memref<4x416xf32, #tpu.memory_space<vmem>>, vector<4x256xf32>
    %147 = vector.broadcast %11 : vector<1x256xf32> to vector<4x256xf32>
    %148 = arith.mulf %146, %147 : vector<4x256xf32>
    %c48_141 = arith.constant 48 : index
    %c0_142 = arith.constant 0 : index
    %149 = vector.load %arg11[%c48_141, %c0_142] : memref<72x256xf32, #tpu.memory_space<vmem>>, vector<4x256xf32>
    tpu.vector_store %arg11[%c48_141, %c0_142], %148 {strides = array<i32>} : memref<72x256xf32, #tpu.memory_space<vmem>>, vector<4x256xf32>,
    %c0_143 = arith.constant 0 : index
    %c144_144 = arith.constant 144 : index
    %150 = vector.load %arg9[%c0_143, %c144_144] : memref<4x416xf32, #tpu.memory_space<vmem>>, vector<4x256xf32>
    %c56_145 = arith.constant 56 : index
    %c0_146 = arith.constant 0 : index
    %151 = vector.load %arg11[%c56_145, %c0_146] : memref<72x256xf32, #tpu.memory_space<vmem>>, vector<4x256xf32>
    tpu.vector_store %arg11[%c56_145, %c0_146], %150 {strides = array<i32>} : memref<72x256xf32, #tpu.memory_space<vmem>>, vector<4x256xf32>,
    %c0_147 = arith.constant 0 : index
    %c145_148 = arith.constant 145 : index
    %152 = vector.load %arg9[%c0_147, %c145_148] : memref<4x416xf32, #tpu.memory_space<vmem>>, vector<4x256xf32>
    %153 = vector.broadcast %13 : vector<1x256xf32> to vector<4x256xf32>
    %154 = arith.mulf %152, %153 : vector<4x256xf32>
    %c64_149 = arith.constant 64 : index
    %c0_150 = arith.constant 0 : index
    %155 = vector.load %arg11[%c64_149, %c0_150] : memref<72x256xf32, #tpu.memory_space<vmem>>, vector<4x256xf32>
    tpu.vector_store %arg11[%c64_149, %c0_150], %154 {strides = array<i32>} : memref<72x256xf32, #tpu.memory_space<vmem>>, vector<4x256xf32>,
    %c0_151 = arith.constant 0 : index
    %c0_152 = arith.constant 0 : index
    %156 = vector.load %arg3[%c0_151, %c0_152] : memref<4x72xf32, #tpu.memory_space<vmem>>, vector<4x72xf32>
    %c0_153 = arith.constant 0 : index
    %c0_154 = arith.constant 0 : index
    %157 = vector.load %arg11[%c0_153, %c0_154] : memref<72x256xf32, #tpu.memory_space<vmem>>, vector<72x256xf32>
    %cst_155 = arith.constant dense<0.000000e+00> : vector<4x256xf32>
    %158 = tpu.matmul %156, %157, %cst_155 {dimension_numbers = #tpu.dot_dimension_numbers<[1], [0], [0], [1], [0, 0, 1, 1], [], []>} : vector<4x72xf32>, vector<72x256xf32>, vector<4x256xf32> -> vector<4x256xf32>
    %c0_156 = arith.constant 0 : index
    %c0_157 = arith.constant 0 : index
    %159 = vector.load %arg4[%c0_156, %c0_157] : memref<4x1xf32, #tpu.memory_space<vmem>>, vector<4x1xf32>
    %160 = vector.broadcast %159 : vector<4x1xf32> to vector<4x256xf32>
    %161 = arith.addf %158, %160 : vector<4x256xf32>
    %cst_158 = arith.constant 0.000000e+00 : f32
    %162 = vector.broadcast %cst_158 : f32 to vector<4x256xf32>
    %163 = arith.maximumf %161, %162 : vector<4x256xf32>
    %c0_159 = arith.constant 0 : index
    %c128_160 = arith.constant 128 : index
    %164 = vector.load %arg10[%c0_159, %c128_160] : memref<4x416xf32, #tpu.memory_space<vmem>>, vector<4x256xf32>
    tpu.vector_store %arg10[%c0_159, %c128_160], %163 {strides = array<i32>} : memref<4x416xf32, #tpu.memory_space<vmem>>, vector<4x256xf32>,
    %c0_161 = arith.constant 0 : index
    %c111_162 = arith.constant 111 : index
    %165 = vector.load %arg10[%c0_161, %c111_162] : memref<4x416xf32, #tpu.memory_space<vmem>>, vector<4x256xf32>
    %166 = vector.broadcast %11 : vector<1x256xf32> to vector<4x256xf32>
    %167 = arith.mulf %165, %166 : vector<4x256xf32>
    %c0_163 = arith.constant 0 : index
    %c0_164 = arith.constant 0 : index
    %168 = vector.load %arg11[%c0_163, %c0_164] : memref<72x256xf32, #tpu.memory_space<vmem>>, vector<4x256xf32>
    tpu.vector_store %arg11[%c0_163, %c0_164], %167 {strides = array<i32>} : memref<72x256xf32, #tpu.memory_space<vmem>>, vector<4x256xf32>,
    %c0_165 = arith.constant 0 : index
    %c112_166 = arith.constant 112 : index
    %169 = vector.load %arg10[%c0_165, %c112_166] : memref<4x416xf32, #tpu.memory_space<vmem>>, vector<4x256xf32>
    %c8_167 = arith.constant 8 : index
    %c0_168 = arith.constant 0 : index
    %170 = vector.load %arg11[%c8_167, %c0_168] : memref<72x256xf32, #tpu.memory_space<vmem>>, vector<4x256xf32>
    tpu.vector_store %arg11[%c8_167, %c0_168], %169 {strides = array<i32>} : memref<72x256xf32, #tpu.memory_space<vmem>>, vector<4x256xf32>,
    %c0_169 = arith.constant 0 : index
    %c113_170 = arith.constant 113 : index
    %171 = vector.load %arg10[%c0_169, %c113_170] : memref<4x416xf32, #tpu.memory_space<vmem>>, vector<4x256xf32>
    %172 = vector.broadcast %13 : vector<1x256xf32> to vector<4x256xf32>
    %173 = arith.mulf %171, %172 : vector<4x256xf32>
    %c16_171 = arith.constant 16 : index
    %c0_172 = arith.constant 0 : index
    %174 = vector.load %arg11[%c16_171, %c0_172] : memref<72x256xf32, #tpu.memory_space<vmem>>, vector<4x256xf32>
    tpu.vector_store %arg11[%c16_171, %c0_172], %173 {strides = array<i32>} : memref<72x256xf32, #tpu.memory_space<vmem>>, vector<4x256xf32>,
    %c0_173 = arith.constant 0 : index
    %c127_174 = arith.constant 127 : index
    %175 = vector.load %arg10[%c0_173, %c127_174] : memref<4x416xf32, #tpu.memory_space<vmem>>, vector<4x256xf32>
    %176 = vector.broadcast %11 : vector<1x256xf32> to vector<4x256xf32>
    %177 = arith.mulf %175, %176 : vector<4x256xf32>
    %c24_175 = arith.constant 24 : index
    %c0_176 = arith.constant 0 : index
    %178 = vector.load %arg11[%c24_175, %c0_176] : memref<72x256xf32, #tpu.memory_space<vmem>>, vector<4x256xf32>
    tpu.vector_store %arg11[%c24_175, %c0_176], %177 {strides = array<i32>} : memref<72x256xf32, #tpu.memory_space<vmem>>, vector<4x256xf32>,
    %c0_177 = arith.constant 0 : index
    %c128_178 = arith.constant 128 : index
    %179 = vector.load %arg10[%c0_177, %c128_178] : memref<4x416xf32, #tpu.memory_space<vmem>>, vector<4x256xf32>
    %c32_179 = arith.constant 32 : index
    %c0_180 = arith.constant 0 : index
    %180 = vector.load %arg11[%c32_179, %c0_180] : memref<72x256xf32, #tpu.memory_space<vmem>>, vector<4x256xf32>
    tpu.vector_store %arg11[%c32_179, %c0_180], %179 {strides = array<i32>} : memref<72x256xf32, #tpu.memory_space<vmem>>, vector<4x256xf32>,
    %c0_181 = arith.constant 0 : index
    %c129_182 = arith.constant 129 : index
    %181 = vector.load %arg10[%c0_181, %c129_182] : memref<4x416xf32, #tpu.memory_space<vmem>>, vector<4x256xf32>
    %182 = vector.broadcast %13 : vector<1x256xf32> to vector<4x256xf32>
    %183 = arith.mulf %181, %182 : vector<4x256xf32>
    %c40_183 = arith.constant 40 : index
    %c0_184 = arith.constant 0 : index
    %184 = vector.load %arg11[%c40_183, %c0_184] : memref<72x256xf32, #tpu.memory_space<vmem>>, vector<4x256xf32>
    tpu.vector_store %arg11[%c40_183, %c0_184], %183 {strides = array<i32>} : memref<72x256xf32, #tpu.memory_space<vmem>>, vector<4x256xf32>,
    %c0_185 = arith.constant 0 : index
    %c143_186 = arith.constant 143 : index
    %185 = vector.load %arg10[%c0_185, %c143_186] : memref<4x416xf32, #tpu.memory_space<vmem>>, vector<4x256xf32>
    %186 = vector.broadcast %11 : vector<1x256xf32> to vector<4x256xf32>
    %187 = arith.mulf %185, %186 : vector<4x256xf32>
    %c48_187 = arith.constant 48 : index
    %c0_188 = arith.constant 0 : index
    %188 = vector.load %arg11[%c48_187, %c0_188] : memref<72x256xf32, #tpu.memory_space<vmem>>, vector<4x256xf32>
    tpu.vector_store %arg11[%c48_187, %c0_188], %187 {strides = array<i32>} : memref<72x256xf32, #tpu.memory_space<vmem>>, vector<4x256xf32>,
    %c0_189 = arith.constant 0 : index
    %c144_190 = arith.constant 144 : index
    %189 = vector.load %arg10[%c0_189, %c144_190] : memref<4x416xf32, #tpu.memory_space<vmem>>, vector<4x256xf32>
    %c56_191 = arith.constant 56 : index
    %c0_192 = arith.constant 0 : index
    %190 = vector.load %arg11[%c56_191, %c0_192] : memref<72x256xf32, #tpu.memory_space<vmem>>, vector<4x256xf32>
    tpu.vector_store %arg11[%c56_191, %c0_192], %189 {strides = array<i32>} : memref<72x256xf32, #tpu.memory_space<vmem>>, vector<4x256xf32>,
    %c0_193 = arith.constant 0 : index
    %c145_194 = arith.constant 145 : index
    %191 = vector.load %arg10[%c0_193, %c145_194] : memref<4x416xf32, #tpu.memory_space<vmem>>, vector<4x256xf32>
    %192 = vector.broadcast %13 : vector<1x256xf32> to vector<4x256xf32>
    %193 = arith.mulf %191, %192 : vector<4x256xf32>
    %c64_195 = arith.constant 64 : index
    %c0_196 = arith.constant 0 : index
    %194 = vector.load %arg11[%c64_195, %c0_196] : memref<72x256xf32, #tpu.memory_space<vmem>>, vector<4x256xf32>
    tpu.vector_store %arg11[%c64_195, %c0_196], %193 {strides = array<i32>} : memref<72x256xf32, #tpu.memory_space<vmem>>, vector<4x256xf32>,
    %c0_197 = arith.constant 0 : index
    %c0_198 = arith.constant 0 : index
    %195 = vector.load %arg5[%c0_197, %c0_198] : memref<4x72xf32, #tpu.memory_space<vmem>>, vector<4x72xf32>
    %c0_199 = arith.constant 0 : index
    %c0_200 = arith.constant 0 : index
    %196 = vector.load %arg11[%c0_199, %c0_200] : memref<72x256xf32, #tpu.memory_space<vmem>>, vector<72x256xf32>
    %cst_201 = arith.constant dense<0.000000e+00> : vector<4x256xf32>
    %197 = tpu.matmul %195, %196, %cst_201 {dimension_numbers = #tpu.dot_dimension_numbers<[1], [0], [0], [1], [0, 0, 1, 1], [], []>} : vector<4x72xf32>, vector<72x256xf32>, vector<4x256xf32> -> vector<4x256xf32>
    %c0_202 = arith.constant 0 : index
    %c0_203 = arith.constant 0 : index
    %198 = vector.load %arg6[%c0_202, %c0_203] : memref<4x1xf32, #tpu.memory_space<vmem>>, vector<4x1xf32>
    %199 = vector.broadcast %198 : vector<4x1xf32> to vector<4x256xf32>
    %200 = arith.addf %197, %199 : vector<4x256xf32>
    %cst_204 = arith.constant dense<0.000000e+00> : vector<4xf32>
    %201 = vector.multi_reduction <add>, %200, %cst_204 [1] : vector<4x256xf32> to vector<4xf32>
    %202 = vector.shape_cast %201 : vector<4xf32> to vector<4x1xf32>
    %cst_205 = arith.constant 2.560000e+02 : f32
    %203 = vector.broadcast %cst_205 : f32 to vector<4x1xf32>
    %204 = arith.divf %202, %203 : vector<4x1xf32>
    %c1_206 = arith.constant 1 : index
    %c0_207 = arith.constant 0 : index
    %205 = vector.load %arg12[%c1_206, %c0_207] : memref<6x1xf32, #tpu.memory_space<vmem>>, vector<4x1xf32>
    tpu.vector_store %arg12[%c1_206, %c0_207], %204 {strides = array<i32>} : memref<6x1xf32, #tpu.memory_space<vmem>>, vector<4x1xf32>,
    %c0_208 = arith.constant 0 : index
    %c0_209 = arith.constant 0 : index
    %206 = vector.load %arg12[%c0_208, %c0_209] : memref<6x1xf32, #tpu.memory_space<vmem>>, vector<4x1xf32>
    %207 = vector.broadcast %14 : f32 to vector<4x1xf32>
    %208 = arith.mulf %207, %206 : vector<4x1xf32>
    %209 = vector.broadcast %15 : f32 to vector<4x1xf32>
    %210 = arith.mulf %209, %204 : vector<4x1xf32>
    %211 = arith.addf %208, %210 : vector<4x1xf32>
    %c2_210 = arith.constant 2 : index
    %c0_211 = arith.constant 0 : index
    %212 = vector.load %arg12[%c2_210, %c0_211] : memref<6x1xf32, #tpu.memory_space<vmem>>, vector<4x1xf32>
    %213 = vector.broadcast %16 : f32 to vector<4x1xf32>
    %214 = arith.mulf %213, %212 : vector<4x1xf32>
    %215 = arith.addf %211, %214 : vector<4x1xf32>
    %216 = arith.negf %215 : vector<4x1xf32>
    %217 = math.exp %216 : vector<4x1xf32>
    %cst_212 = arith.constant 1.000000e+00 : f32
    %218 = vector.broadcast %cst_212 : f32 to vector<4x1xf32>
    %219 = arith.addf %218, %217 : vector<4x1xf32>
    %220 = arith.divf %218, %219 : vector<4x1xf32>
    %221 = vector.broadcast %220 : vector<4x1xf32> to vector<4x256xf32>
    %222 = arith.mulf %200, %221 : vector<4x256xf32>
    %223 = arith.addf %222, %124 : vector<4x256xf32>
    %cst_213 = arith.constant 0.000000e+00 : f32
    %224 = vector.broadcast %cst_213 : f32 to vector<4x256xf32>
    %225 = arith.maximumf %223, %224 : vector<4x256xf32>
    %c1_214 = arith.constant 1 : index
    %c0_215 = arith.constant 0 : index
    %c0_216 = arith.constant 0 : index
    %226 = vector.load %arg8[%c1_214, %c0_215, %c0_216] : memref<2x4x256xf32, #tpu.memory_space<vmem>>, vector<1x4x256xf32>
    %227 = vector.shape_cast %226 : vector<1x4x256xf32> to vector<4x256xf32>
    %228 = vector.shape_cast %225 : vector<4x256xf32> to vector<1x4x256xf32>
    tpu.vector_store %arg8[%c1_214, %c0_215, %c0_216], %228 {strides = array<i32>} : memref<2x4x256xf32, #tpu.memory_space<vmem>>, vector<1x4x256xf32>,
    return
  }
  func.func @transform_0(%arg0: i32) -> (i32, i32, i32) {
    %c0_i32 = arith.constant 0 : i32
    %c0_i32_0 = arith.constant 0 : i32
    %c0_i32_1 = arith.constant 0 : i32
    return %arg0, %c0_i32, %c0_i32_0 : i32, i32, i32
  }
  func.func @transform_1(%arg0: i32) -> (i32, i32, i32) {
    %c0_i32 = arith.constant 0 : i32
    %c0_i32_0 = arith.constant 0 : i32
    %c0_i32_1 = arith.constant 0 : i32
    %c0_i32_2 = arith.constant 0 : i32
    return %c0_i32, %c0_i32_0, %c0_i32_1 : i32, i32, i32
  }
  func.func @transform_2(%arg0: i32) -> (i32, i32) {
    %c0_i32 = arith.constant 0 : i32
    %c0_i32_0 = arith.constant 0 : i32
    %c0_i32_1 = arith.constant 0 : i32
    return %c0_i32, %c0_i32_0 : i32, i32
  }
  func.func @transform_3(%arg0: i32) -> (i32, i32) {
    %c0_i32 = arith.constant 0 : i32
    %c0_i32_0 = arith.constant 0 : i32
    %c0_i32_1 = arith.constant 0 : i32
    return %c0_i32, %c0_i32_0 : i32, i32
  }
  func.func @transform_4(%arg0: i32) -> (i32, i32) {
    %c0_i32 = arith.constant 0 : i32
    %c0_i32_0 = arith.constant 0 : i32
    %c0_i32_1 = arith.constant 0 : i32
    return %c0_i32, %c0_i32_0 : i32, i32
  }
  func.func @transform_5(%arg0: i32) -> (i32, i32) {
    %c0_i32 = arith.constant 0 : i32
    %c0_i32_0 = arith.constant 0 : i32
    %c0_i32_1 = arith.constant 0 : i32
    return %c0_i32, %c0_i32_0 : i32, i32
  }
  func.func @transform_6(%arg0: i32) -> i32 {
    %c0_i32 = arith.constant 0 : i32
    %c0_i32_0 = arith.constant 0 : i32
    return %c0_i32 : i32
  }
  func.func @transform_7(%arg0: i32) -> (i32, i32, i32) {
    %c0_i32 = arith.constant 0 : i32
    %c0_i32_0 = arith.constant 0 : i32
    %c0_i32_1 = arith.constant 0 : i32
    return %arg0, %c0_i32, %c0_i32_0 : i32, i32, i32
  }
}

</mosaic_0001>

<llo_original>
// kernel: tpu_custom_call.1
$region0: #{tpu_custom_call.1}
  #allocation0 [shape = 'u32[]', space=smem, size = 0x4, offset = 0x4, fixed_abs, tag = 'smem constant byte address 0x4 - core index']
  #allocation1 [shape = 'u32[144,128]{1,0:T(1,128)}', space=vmem, size = 0x12000, scoped, tag = 'internal scratch']
  #allocation2 [shape = 'f32[4,416]{1,0:T(4,128)}', space=vmem, size = 0x2000, scoped, tag = 'scratch operand']
  #allocation3 [shape = 'f32[4,416]{1,0:T(4,128)}', space=vmem, size = 0x2000, scoped, tag = 'scratch operand']
  #allocation4 [shape = 'f32[72,256]{1,0:T(8,128)}', space=vmem, size = 0x12000, scoped, tag = 'scratch operand']
  #allocation5 [shape = 'f32[6,1]{1,0:T(8,128)}', space=vmem, size = 0x1000, scoped, tag = 'scratch operand']
  %s0 = inlined_call_operand.hbm [shape: f32[2,4,256], index: 0, kind: input, shape index: {}]
  %s1 = inlined_call_operand.vmem [shape: f32[2,1,256], index: 1, kind: input, shape index: {}]
  %s2 = inlined_call_operand.vmem [shape: f32[4,72], index: 2, kind: input, shape index: {}]
  %s3 = inlined_call_operand.vmem [shape: f32[4,1], index: 3, kind: input, shape index: {}]
  %s4 = inlined_call_operand.vmem [shape: f32[4,72], index: 4, kind: input, shape index: {}]
  %s5 = inlined_call_operand.vmem [shape: f32[4,1], index: 5, kind: input, shape index: {}]
  %s6 = inlined_call_operand.vmem [shape: f32[3], index: 6, kind: input, shape index: {}]
  %s7 = inlined_call_operand.hbm [shape: f32[2,4,256], index: 7, kind: output, shape index: {}]
  %s8 = sld [smem:[#allocation0]]
  $region46: #{tpu_custom_call.1} parent=0
    _
  %s10 = ssub.s32 1, %s8
  %s11 = scalar_select 0, %s10, %s8
  $region1: #{tpu_custom_call.1} parent=0
    #allocation6 [shape = 'u8[8192]{0}', space=vmem, size = 0x2000, scoped, tag = 'input window, operand 0, single buffered']
    #allocation7 [shape = 's32[1]{0}', space=sflag, size = 0x4, scoped, tag = 'scoped memory for tpu_custom_call.1']
    #allocation8 [shape = 's32[1]{0}', space=sflag, size = 0x4, scoped, tag = 'scoped memory for tpu_custom_call.1']
    #allocation9 [shape = 's32[1]{0}', space=sflag, size = 0x4, scoped, tag = 'scoped memory for tpu_custom_call.1']
    #allocation10 [shape = 'u8[512]{0}', space=smem, size = 0x200, scoped, tag = 'input window, operand 6, single buffered']
    #allocation11 [shape = 'u8[8192]{0}', space=vmem, size = 0x2000, scoped, tag = 'output window, operand 0, single buffered']
    %12 = vsyncpa [#allocation7], 0
    %13 = vsyncpa [#allocation9], 0
    %14 = vsyncpa [#allocation8], 0
    // Predicated region
    $region2: #{tpu_custom_call.1} parent=1 // pred_check
      _
    $region3: #{tpu_custom_call.1} parent=1 // pred_check_branch
      %16 = sbr.rel (0) target = $region5
    $region4: #{tpu_custom_call.1} parent=1 // pred_region
      %s18 = ssub.s32 256, 256
      %19 = vsyncadd [#allocation7], %s18
      %s20 = sshll.u32 [#allocation6], 4
      %s21 = int_to_ptr.vmem [resolvable:$true] %s20
      %26 = dma.hbm_to_vmem [thread:$0]  %s0, 256, %s21, [#allocation7], 128, 128, 8
    $region5: #{tpu_custom_call.1} parent=1 // pred_fallthru
      _
    // Predicated region
    $region6: #{tpu_custom_call.1} parent=1 // pred_check
      _
    $region7: #{tpu_custom_call.1} parent=1 // pred_check_branch
      %28 = sbr.rel (0) target = $region9
    $region8: #{tpu_custom_call.1} parent=1 // pred_region
      _
    $region9: #{tpu_custom_call.1} parent=1 // pred_fallthru
      _
    // Predicated region
    $region10: #{tpu_custom_call.1} parent=1 // pred_check
      _
    $region11: #{tpu_custom_call.1} parent=1 // pred_check_branch
      %30 = sbr.rel (0) target = $region13
    $region12: #{tpu_custom_call.1} parent=1 // pred_region
      _
    $region13: #{tpu_custom_call.1} parent=1 // pred_fallthru
      _
    // Predicated region
    $region14: #{tpu_custom_call.1} parent=1 // pred_check
      _
    $region15: #{tpu_custom_call.1} parent=1 // pred_check_branch
      %32 = sbr.rel (0) target = $region17
    $region16: #{tpu_custom_call.1} parent=1 // pred_region
      _
    $region17: #{tpu_custom_call.1} parent=1 // pred_fallthru
      _
    // Predicated region
    $region18: #{tpu_custom_call.1} parent=1 // pred_check
      _
    $region19: #{tpu_custom_call.1} parent=1 // pred_check_branch
      %34 = sbr.rel (0) target = $region21
    $region20: #{tpu_custom_call.1} parent=1 // pred_region
      _
    $region21: #{tpu_custom_call.1} parent=1 // pred_fallthru
      _
    // Predicated region
    $region22: #{tpu_custom_call.1} parent=1 // pred_check
      _
    $region23: #{tpu_custom_call.1} parent=1 // pred_check_branch
      %36 = sbr.rel (0) target = $region25
    $region24: #{tpu_custom_call.1} parent=1 // pred_region
      _
    $region25: #{tpu_custom_call.1} parent=1 // pred_fallthru
      _
    // Predicated region
    $region26: #{tpu_custom_call.1} parent=1 // pred_check
      _
    $region27: #{tpu_custom_call.1} parent=1 // pred_check_branch
      %38 = sbr.rel (0) target = $region29
    $region28: #{tpu_custom_call.1} parent=1 // pred_region
      %s40 = ssub.s32 16, 16
      %41 = vsyncadd [#allocation9], %s40
      %s43 = sshll.u32 %s6, 4
      %s44 = int_to_ptr.vmem [resolvable:$true] %s43
      %46 = dma.vmem_to_smem %s44, 16, [#allocation10], [#allocation9]
    $region29: #{tpu_custom_call.1} parent=1 // pred_fallthru
      _
    // Predicated region
    $region30: #{tpu_custom_call.1} parent=1 // pred_check
      _
    $region31: #{tpu_custom_call.1} parent=1 // pred_check_branch
      %48 = sbr.rel (0) target = $region33
    $region32: #{tpu_custom_call.1} parent=1 // pred_region
      %49 = dma.done [#allocation7], 256
    $region33: #{tpu_custom_call.1} parent=1 // pred_fallthru
      _
    // Predicated region
    $region34: #{tpu_custom_call.1} parent=1 // pred_check
      _
    $region35: #{tpu_custom_call.1} parent=1 // pred_check_branch
      %51 = sbr.rel (0) target = $region37
    $region36: #{tpu_custom_call.1} parent=1 // pred_region
      %52 = dma.done [#allocation9], 16
    $region37: #{tpu_custom_call.1} parent=1 // pred_fallthru
      _
    %53 = sfence
    %54 = vst [vmem:[#allocation2] sm:$0xf] 0.0
    %vm55 = vcmask 257024
    %56 = vst.msk [vmem:[#allocation2 + $0xc] sm:$0xf] %vm55, 0.0
    %57 = vst [vmem:[#allocation3] sm:$0xf] 0.0
    %58 = vst.msk [vmem:[#allocation3 + $0xc] sm:$0xf] %vm55, 0.0
    %vm59 = vcmask 5120
    %60 = vst.msk [vmem:[#allocation5] sm:$0x3f] %vm59, 0.0
    %61 = vst [vmem:[#allocation4] sm:$0xff] 0.0
    %62 = vst [vmem:[#allocation4 + $0x8] sm:$0xff] 0.0
    %63 = vst [vmem:[#allocation4 + $0x10] sm:$0xff] 0.0
    %64 = vst [vmem:[#allocation4 + $0x18] sm:$0xff] 0.0
    %65 = vst [vmem:[#allocation4 + $0x20] sm:$0xff] 0.0
    %66 = vst [vmem:[#allocation4 + $0x28] sm:$0xff] 0.0
    %67 = vst [vmem:[#allocation4 + $0x30] sm:$0xff] 0.0
    %68 = vst [vmem:[#allocation4 + $0x38] sm:$0xff] 0.0
    %69 = vst [vmem:[#allocation4 + $0x40] sm:$0xff] 0.0
    %70 = vst [vmem:[#allocation4 + $0x48] sm:$0xff] 0.0
    %71 = vst [vmem:[#allocation4 + $0x50] sm:$0xff] 0.0
    %72 = vst [vmem:[#allocation4 + $0x58] sm:$0xff] 0.0
    %73 = vst [vmem:[#allocation4 + $0x60] sm:$0xff] 0.0
    %74 = vst [vmem:[#allocation4 + $0x68] sm:$0xff] 0.0
    %75 = vst [vmem:[#allocation4 + $0x70] sm:$0xff] 0.0
    %76 = vst [vmem:[#allocation4 + $0x78] sm:$0xff] 0.0
    %77 = vst [vmem:[#allocation4 + $0x80] sm:$0xff] 0.0
    %78 = vst [vmem:[#allocation4 + $0x88] sm:$0xff] 0.0
    %v79 = vld [vmem:[%s1] sm:$0x3]
    %s80 = scalar_lea.vmem %s1, 2
    %v81 = vld [vmem:[%s80] sm:$0x3]
    %s82 = sld [smem:[#allocation10]]
    %s83 = sld [smem:[#allocation10 + $0x1]]
    %s84 = sld [smem:[#allocation10 + $0x2]]
    %v85 = vld [vmem:[#allocation6] sm:$0xff]
    %86 = vst [vmem:[#allocation2 + $0x4] sm:$0xff] %v85
    %v87 = vld [vmem:[#allocation2] sm:$0xff]
    %v88 = vld [vmem:[#allocation2 + $0x8] sm:$0xf]
    %v90 = vlaneseq
    %v91 = vshrl.u32 %v90, 7
    %v92 = vsub.s32 0, %v91
    %v93 = vrot.slane %v79, %v92
    %v94 = vlaneseq
    %v95 = vshrl.u32 %v94, 7
    %v96 = vsub.s32 1, %v95
    %v97 = vrot.slane %v79, %v96
    %v98 = vcombine.low %v93, %v97
    %99 = vrot.lane.b32.xlu0 %v98, 111
    %v100 = vpop.permute.xlu0 %99
    %v101 = vrot.slane %v100, 4
    %vm102 = vcmask 908288
    %v103 = vsel %vm102, %v101, %v100
    %v106 = vmul.f32 %v87, %v103
    %v107 = vmul.f32 %v88, %v101
    %v110 = vcombine.high %v106, %v106
    %111 = vrot.lane.b32.xlu0 %v106, 17
    %v112 = vpop.permute.xlu0 %111
    %113 = vrot.lane.b32.xlu0 %v110, 17
    %v114 = vpop.permute.xlu0 %113
    %115 = vrot.lane.b32.xlu0 %v107, 17
    %v116 = vpop.permute.xlu0 %115
    %vm117 = vcmask 138240
    %v118 = vsel %vm117, %v112, %v114
    %v119 = vsel %vm117, %v114, %v116
    %122 = vst [vmem:[#allocation4] sm:$0xf] %v118
    %123 = vst [vmem:[#allocation4 + $0x8] sm:$0xf] %v119
    %v124 = vld [vmem:[#allocation2] sm:$0xff]
    %v125 = vld [vmem:[#allocation2 + $0x8] sm:$0xf]
    %v128 = vcombine.high %v124, %v124
    %129 = vrot.lane.b32.xlu0 %v124, 16
    %v130 = vpop.permute.xlu0 %129
    %131 = vrot.lane.b32.xlu0 %v128, 16
    %v132 = vpop.permute.xlu0 %131
    %133 = vrot.lane.b32.xlu0 %v125, 16
    %v134 = vpop.permute.xlu0 %133
    %vm135 = vcmask 130048
    %v136 = vsel %vm135, %v130, %v132
    %v137 = vsel %vm135, %v132, %v134
    %140 = vst [vmem:[#allocation4 + $0x10] sm:$0xf] %v136
    %141 = vst [vmem:[#allocation4 + $0x18] sm:$0xf] %v137
    %v142 = vld [vmem:[#allocation2] sm:$0xff]
    %v143 = vld [vmem:[#allocation2 + $0x8] sm:$0xf]
    %v145 = vlaneseq
    %v146 = vshrl.u32 %v145, 7
    %v147 = vsub.s32 0, %v146
    %v148 = vrot.slane %v81, %v147
    %v149 = vlaneseq
    %v150 = vshrl.u32 %v149, 7
    %v151 = vsub.s32 1, %v150
    %v152 = vrot.slane %v81, %v151
    %v153 = vcombine.low %v148, %v152
    %154 = vrot.lane.b32.xlu0 %v153, 113
    %v155 = vpop.permute.xlu0 %154
    %v156 = vrot.slane %v155, 4
    %vm157 = vcmask 924672
    %v158 = vsel %vm157, %v156, %v155
    %v161 = vmul.f32 %v142, %v158
    %v162 = vmul.f32 %v143, %v156
    %v165 = vcombine.high %v161, %v161
    %166 = vrot.lane.b32.xlu0 %v161, 15
    %v167 = vpop.permute.xlu0 %166
    %168 = vrot.lane.b32.xlu0 %v165, 15
    %v169 = vpop.permute.xlu0 %168
    %170 = vrot.lane.b32.xlu0 %v162, 15
    %v171 = vpop.permute.xlu0 %170
    %vm172 = vcmask 121856
    %v173 = vsel %vm172, %v167, %v169
    %v174 = vsel %vm172, %v169, %v171
    %177 = vst [vmem:[#allocation4 + $0x20] sm:$0xf] %v173
    %178 = vst [vmem:[#allocation4 + $0x28] sm:$0xf] %v174
    %v179 = vld [vmem:[#allocation2] sm:$0xff]
    %v180 = vld [vmem:[#allocation2 + $0x8] sm:$0xf]
    %181 = vrot.lane.b32.xlu0 %v98, 127
    %v182 = vpop.permute.xlu0 %181
    %v183 = vrot.slane %v182, 4
    %vm184 = vcmask 1039360
    %v185 = vsel %vm184, %v183, %v182
    %v188 = vmul.f32 %v179, %v185
    %v189 = vmul.f32 %v180, %v183
    %v192 = vcombine.high %v188, %v188
    %193 = vrot.lane.b32.xlu0 %v188, 1
    %v194 = vpop.permute.xlu0 %193
    %195 = vrot.lane.b32.xlu0 %v192, 1
    %v196 = vpop.permute.xlu0 %195
    %197 = vrot.lane.b32.xlu0 %v189, 1
    %v198 = vpop.permute.xlu0 %197
    %vm199 = vcmask 7168
    %v200 = vsel %vm199, %v194, %v196
    %v201 = vsel %vm199, %v196, %v198
    %204 = vst [vmem:[#allocation4 + $0x30] sm:$0xf] %v200
    %205 = vst [vmem:[#allocation4 + $0x38] sm:$0xf] %v201
    %v206 = vld [vmem:[#allocation2 + $0x4] sm:$0xff]
    %v208 = vcombine.high %v206, %v206
    %210 = vst [vmem:[#allocation4 + $0x40] sm:$0xf] %v206
    %211 = vst [vmem:[#allocation4 + $0x48] sm:$0xf] %v208
    %v212 = vld [vmem:[#allocation2 + $0x4] sm:$0xff]
    %v213 = vld [vmem:[#allocation2 + $0xc] sm:$0xf]
    %214 = vrot.lane.b32.xlu0 %v153, 1
    %v215 = vpop.permute.xlu0 %214
    %v216 = vrot.slane %v215, 4
    %v217 = vsel %vm199, %v216, %v215
    %v220 = vmul.f32 %v212, %v217
    %v221 = vmul.f32 %v213, %v216
    %v224 = vcombine.high %v220, %v220
    %225 = vrot.lane.b32.xlu0 %v220, 127
    %v226 = vpop.permute.xlu0 %225
    %227 = vrot.lane.b32.xlu0 %v224, 127
    %v228 = vpop.permute.xlu0 %227
    %229 = vrot.lane.b32.xlu0 %v221, 127
    %v230 = vpop.permute.xlu0 %229
    %v231 = vsel %vm184, %v226, %v228
    %v232 = vsel %vm184, %v228, %v230
    %235 = vst [vmem:[#allocation4 + $0x50] sm:$0xf] %v231
    %236 = vst [vmem:[#allocation4 + $0x58] sm:$0xf] %v232
    %v237 = vld [vmem:[#allocation2 + $0x4] sm:$0xff]
    %v238 = vld [vmem:[#allocation2 + $0xc] sm:$0xf]
    %239 = vrot.lane.b32.xlu0 %v98, 15
    %v240 = vpop.permute.xlu0 %239
    %v241 = vrot.slane %v240, 4
    %v242 = vsel %vm172, %v241, %v240
    %v245 = vmul.f32 %v237, %v242
    %v246 = vmul.f32 %v238, %v241
    %v249 = vcombine.high %v245, %v245
    %250 = vrot.lane.b32.xlu0 %v245, 113
    %v251 = vpop.permute.xlu0 %250
    %252 = vrot.lane.b32.xlu0 %v249, 113
    %v253 = vpop.permute.xlu0 %252
    %254 = vrot.lane.b32.xlu0 %v246, 113
    %v255 = vpop.permute.xlu0 %254
    %v256 = vsel %vm157, %v251, %v253
    %v257 = vsel %vm157, %v253, %v255
    %260 = vst [vmem:[#allocation4 + $0x60] sm:$0xf] %v256
    %261 = vst [vmem:[#allocation4 + $0x68] sm:$0xf] %v257
    %v262 = vld [vmem:[#allocation2 + $0x4] sm:$0xff]
    %v263 = vld [vmem:[#allocation2 + $0xc] sm:$0xf]
    %v266 = vcombine.high %v262, %v262
    %267 = vrot.lane.b32.xlu0 %v262, 112
    %v268 = vpop.permute.xlu0 %267
    %269 = vrot.lane.b32.xlu0 %v266, 112
    %v270 = vpop.permute.xlu0 %269
    %271 = vrot.lane.b32.xlu0 %v263, 112
    %v272 = vpop.permute.xlu0 %271
    %vm273 = vcmask 916480
    %v274 = vsel %vm273, %v268, %v270
    %v275 = vsel %vm273, %v270, %v272
    %278 = vst [vmem:[#allocation4 + $0x70] sm:$0xf] %v274
    %279 = vst [vmem:[#allocation4 + $0x78] sm:$0xf] %v275
    %v280 = vld [vmem:[#allocation2 + $0x4] sm:$0xff]
    %v281 = vld [vmem:[#allocation2 + $0xc] sm:$0xf]
    %282 = vrot.lane.b32.xlu0 %v153, 17
    %v283 = vpop.permute.xlu0 %282
    %v284 = vrot.slane %v283, 4
    %v285 = vsel %vm117, %v284, %v283
    %v288 = vmul.f32 %v280, %v285
    %v289 = vmul.f32 %v281, %v284
    %v292 = vcombine.high %v288, %v288
    %293 = vrot.lane.b32.xlu0 %v288, 111
    %v294 = vpop.permute.xlu0 %293
    %295 = vrot.lane.b32.xlu0 %v292, 111
    %v296 = vpop.permute.xlu0 %295
    %297 = vrot.lane.b32.xlu0 %v289, 111
    %v298 = vpop.permute.xlu0 %297
    %v299 = vsel %vm102, %v294, %v296
    %v300 = vsel %vm102, %v296, %v298
    %303 = vst [vmem:[#allocation4 + $0x80] sm:$0xf] %v299
    %304 = vst [vmem:[#allocation4 + $0x88] sm:$0xf] %v300
    %v305 = vld [vmem:[%s2] sm:$0xf]
    %v306 = vld [vmem:[#allocation4] sm:$0xff]
    %v307 = vld [vmem:[#allocation4 + $0x8] sm:$0xff]
    %v308 = vld [vmem:[#allocation4 + $0x10] sm:$0xff]
    %v309 = vld [vmem:[#allocation4 + $0x18] sm:$0xff]
    %v310 = vld [vmem:[#allocation4 + $0x20] sm:$0xff]
    %v311 = vld [vmem:[#allocation4 + $0x28] sm:$0xff]
    %v312 = vld [vmem:[#allocation4 + $0x30] sm:$0xff]
    %v313 = vld [vmem:[#allocation4 + $0x38] sm:$0xff]
    %v314 = vld [vmem:[#allocation4 + $0x40] sm:$0xff]
    %v315 = vld [vmem:[#allocation4 + $0x48] sm:$0xff]
    %v316 = vld [vmem:[#allocation4 + $0x50] sm:$0xff]
    %v317 = vld [vmem:[#allocation4 + $0x58] sm:$0xff]
    %v318 = vld [vmem:[#allocation4 + $0x60] sm:$0xff]
    %v319 = vld [vmem:[#allocation4 + $0x68] sm:$0xff]
    %v320 = vld [vmem:[#allocation4 + $0x70] sm:$0xff]
    %v321 = vld [vmem:[#allocation4 + $0x78] sm:$0xff]
    %v322 = vld [vmem:[#allocation4 + $0x80] sm:$0xff]
    %v323 = vld [vmem:[#allocation4 + $0x88] sm:$0xff]
    %v324 = vld [vmem:[%s3] sm:$0xf]
    %326 = vset.pattern.permute.xlu0 0
    %327 = vperm.xlu0 %326, %v324
    %v328 = vpop.permute.xlu0 %327
    %vm330 = vcmask 588800
    %v332 = vsel %vm330, %v305, 0
    %334 = vmatprep.subr.mxu0 %v307
    %335 = vmatpush1.msra.mxu0 %v306
    %336 = vmatprep.subr.mxu0 %v309
    %337 = vmatpush1.msra.mxu0 %v308
    %338 = vmatprep.subr.mxu0 %v311
    %339 = vmatpush1.msra.mxu0 %v310
    %340 = vmatprep.subr.mxu0 %v313
    %341 = vmatpush1.msra.mxu0 %v312
    %342 = vmatprep.subr.mxu0 %v315
    %343 = vmatpush1.msra.mxu0 %v314
    %344 = vmatprep.subr.mxu0 %v317
    %345 = vmatpush1.msra.mxu0 %v316
    %346 = vmatprep.subr.mxu0 %v319
    %347 = vmatpush1.msra.mxu0 %v318
    %348 = vmatprep.subr.mxu0 %v321
    %349 = vmatpush1.msra.mxu0 %v320
    %350 = vmatprep.subr.mxu0 %v323
    %351 = vmatpush1.msra.mxu0 %v322
    %352 = vmatprep.subr.mxu0 0.0
    %353 = vmatpush1.msra.mxu0 0.0
    %354 = vmatprep.subr.mxu0 0.0
    %355 = vmatpush1.msra.mxu0 0.0
    %356 = vmatprep.subr.mxu0 0.0
    %357 = vmatpush1.msra.mxu0 0.0
    %358 = vmatprep.subr.mxu0 0.0
    %359 = vmatpush1.msra.mxu0 0.0
    %360 = vmatprep.subr.mxu0 0.0
    %361 = vmatpush1.msra.mxu0 0.0
    %362 = vmatprep.subr.mxu0 0.0
    %363 = vmatpush1.msra.mxu0 0.0
    %364 = vmatprep.subr.mxu0 0.0
    %365 = vmatpush1.msra.mxu0 0.0
    %366 = vmatprep.subr.mxu0 0.0
    %367 = vmatpush1.msra.mxu0 0.0
    %368 = vmatprep.subr.mxu0 0.0
    %369 = vmatpush1.msra.mxu0 0.0
    %370 = vmatprep.subr.mxu0 0.0
    %371 = vmatpush1.msra.mxu0 0.0
    %372 = vmatprep.subr.mxu0 0.0
    %373 = vmatpush1.msra.mxu0 0.0
    %374 = vmatprep.subr.mxu0 0.0
    %375 = vmatpush1.msra.mxu0 0.0
    %376 = vmatprep.subr.mxu0 0.0
    %377 = vmatpush1.msra.mxu0 0.0
    %378 = vmatprep.subr.mxu0 0.0
    %379 = vmatpush1.msra.mxu0 0.0
    %380 = vmatprep.subr.mxu0 0.0
    %381 = vmatpush1.msra.mxu0 0.0
    %382 = vmatprep.subr.mxu0 0.0
    %383 = vmatpush1.msra.mxu0 0.0
    %384 = vmatprep.subr.mxu0 0.0
    %385 = vmatpush1.msra.mxu0 0.0
    %386 = vmatprep.subr.mxu0 0.0
    %387 = vmatpush1.msra.mxu0 0.0
    %388 = vmatprep.subr.mxu0 0.0
    %389 = vmatpush1.msra.mxu0 0.0
    %390 = vmatprep.subr.mxu0 0.0
    %391 = vmatpush1.msra.mxu0 0.0
    %392 = vmatprep.subr.mxu0 0.0
    %393 = vmatpush1.msra.mxu0 0.0
    %394 = vmatprep.subr.mxu0 0.0
    %395 = vmatpush1.msra.mxu0 0.0
    %396 = vmatprep.subr.mxu0 0.0
    %397 = vmatpush1.msra.mxu0 0.0
    %398 = vmatprep.mubr.f32.mxu0 0.0
    %399 = vmatmul.mubr.f32.gmra.mrb[0].mxu0 %v332
    %v400 = vpop.f32.mrb[0].mxu0
    %v401 = vadd.f32 %v328, %v400
    %v402 = vpop.f32.mrb[0].mxu0
    %v403 = vadd.f32 %v328, %v402
    %404 = vdwg.mxu0
    %v405 = vmax.f32 %v401, 0.0
    %v406 = vmax.f32 %v403, 0.0
    %v409 = vcombine.low %v405, %v406
    %411 = vst [vmem:[#allocation3 + $0x4] sm:$0xff] %v409
    %v412 = vld [vmem:[#allocation3] sm:$0xff]
    %v413 = vld [vmem:[#allocation3 + $0x8] sm:$0xf]
    %v414 = vmul.f32 %v412, %v103
    %v415 = vmul.f32 %v413, %v101
    %v418 = vcombine.high %v414, %v414
    %419 = vrot.lane.b32.xlu0 %v414, 17
    %v420 = vpop.permute.xlu0 %419
    %421 = vrot.lane.b32.xlu0 %v418, 17
    %v422 = vpop.permute.xlu0 %421
    %423 = vrot.lane.b32.xlu0 %v415, 17
    %v424 = vpop.permute.xlu0 %423
    %v425 = vsel %vm117, %v420, %v422
    %v426 = vsel %vm117, %v422, %v424
    %429 = vst [vmem:[#allocation4] sm:$0xf] %v425
    %430 = vst [vmem:[#allocation4 + $0x8] sm:$0xf] %v426
    %v431 = vld [vmem:[#allocation3] sm:$0xff]
    %v432 = vld [vmem:[#allocation3 + $0x8] sm:$0xf]
    %v435 = vcombine.high %v431, %v431
    %436 = vrot.lane.b32.xlu0 %v431, 16
    %v437 = vpop.permute.xlu0 %436
    %438 = vrot.lane.b32.xlu0 %v435, 16
    %v439 = vpop.permute.xlu0 %438
    %440 = vrot.lane.b32.xlu0 %v432, 16
    %v441 = vpop.permute.xlu0 %440
    %v442 = vsel %vm135, %v437, %v439
    %v443 = vsel %vm135, %v439, %v441
    %446 = vst [vmem:[#allocation4 + $0x10] sm:$0xf] %v442
    %447 = vst [vmem:[#allocation4 + $0x18] sm:$0xf] %v443
    %v448 = vld [vmem:[#allocation3] sm:$0xff]
    %v449 = vld [vmem:[#allocation3 + $0x8] sm:$0xf]
    %v450 = vmul.f32 %v448, %v158
    %v451 = vmul.f32 %v449, %v156
    %v454 = vcombine.high %v450, %v450
    %455 = vrot.lane.b32.xlu0 %v450, 15
    %v456 = vpop.permute.xlu0 %455
    %457 = vrot.lane.b32.xlu0 %v454, 15
    %v458 = vpop.permute.xlu0 %457
    %459 = vrot.lane.b32.xlu0 %v451, 15
    %v460 = vpop.permute.xlu0 %459
    %v461 = vsel %vm172, %v456, %v458
    %v462 = vsel %vm172, %v458, %v460
    %465 = vst [vmem:[#allocation4 + $0x20] sm:$0xf] %v461
    %466 = vst [vmem:[#allocation4 + $0x28] sm:$0xf] %v462
    %v467 = vld [vmem:[#allocation3] sm:$0xff]
    %v468 = vld [vmem:[#allocation3 + $0x8] sm:$0xf]
    %v469 = vmul.f32 %v467, %v185
    %v470 = vmul.f32 %v468, %v183
    %v473 = vcombine.high %v469, %v469
    %474 = vrot.lane.b32.xlu0 %v469, 1
    %v475 = vpop.permute.xlu0 %474
    %476 = vrot.lane.b32.xlu0 %v473, 1
    %v477 = vpop.permute.xlu0 %476
    %478 = vrot.lane.b32.xlu0 %v470, 1
    %v479 = vpop.permute.xlu0 %478
    %v480 = vsel %vm199, %v475, %v477
    %v481 = vsel %vm199, %v477, %v479
    %484 = vst [vmem:[#allocation4 + $0x30] sm:$0xf] %v480
    %485 = vst [vmem:[#allocation4 + $0x38] sm:$0xf] %v481
    %v486 = vld [vmem:[#allocation3 + $0x4] sm:$0xff]
    %v488 = vcombine.high %v486, %v486
    %490 = vst [vmem:[#allocation4 + $0x40] sm:$0xf] %v486
    %491 = vst [vmem:[#allocation4 + $0x48] sm:$0xf] %v488
    %v492 = vld [vmem:[#allocation3 + $0x4] sm:$0xff]
    %v493 = vld [vmem:[#allocation3 + $0xc] sm:$0xf]
    %v494 = vmul.f32 %v492, %v217
    %v495 = vmul.f32 %v493, %v216
    %v498 = vcombine.high %v494, %v494
    %499 = vrot.lane.b32.xlu0 %v494, 127
    %v500 = vpop.permute.xlu0 %499
    %501 = vrot.lane.b32.xlu0 %v498, 127
    %v502 = vpop.permute.xlu0 %501
    %503 = vrot.lane.b32.xlu0 %v495, 127
    %v504 = vpop.permute.xlu0 %503
    %v505 = vsel %vm184, %v500, %v502
    %v506 = vsel %vm184, %v502, %v504
    %509 = vst [vmem:[#allocation4 + $0x50] sm:$0xf] %v505
    %510 = vst [vmem:[#allocation4 + $0x58] sm:$0xf] %v506
    %v511 = vld [vmem:[#allocation3 + $0x4] sm:$0xff]
    %v512 = vld [vmem:[#allocation3 + $0xc] sm:$0xf]
    %v513 = vmul.f32 %v511, %v242
    %v514 = vmul.f32 %v512, %v241
    %v517 = vcombine.high %v513, %v513
    %518 = vrot.lane.b32.xlu0 %v513, 113
    %v519 = vpop.permute.xlu0 %518
    %520 = vrot.lane.b32.xlu0 %v517, 113
    %v521 = vpop.permute.xlu0 %520
    %522 = vrot.lane.b32.xlu0 %v514, 113
    %v523 = vpop.permute.xlu0 %522
    %v524 = vsel %vm157, %v519, %v521
    %v525 = vsel %vm157, %v521, %v523
    %528 = vst [vmem:[#allocation4 + $0x60] sm:$0xf] %v524
    %529 = vst [vmem:[#allocation4 + $0x68] sm:$0xf] %v525
    %v530 = vld [vmem:[#allocation3 + $0x4] sm:$0xff]
    %v531 = vld [vmem:[#allocation3 + $0xc] sm:$0xf]
    %v534 = vcombine.high %v530, %v530
    %535 = vrot.lane.b32.xlu0 %v530, 112
    %v536 = vpop.permute.xlu0 %535
    %537 = vrot.lane.b32.xlu0 %v534, 112
    %v538 = vpop.permute.xlu0 %537
    %539 = vrot.lane.b32.xlu0 %v531, 112
    %v540 = vpop.permute.xlu0 %539
    %v541 = vsel %vm273, %v536, %v538
    %v542 = vsel %vm273, %v538, %v540
    %545 = vst [vmem:[#allocation4 + $0x70] sm:$0xf] %v541
    %546 = vst [vmem:[#allocation4 + $0x78] sm:$0xf] %v542
    %v547 = vld [vmem:[#allocation3 + $0x4] sm:$0xff]
    %v548 = vld [vmem:[#allocation3 + $0xc] sm:$0xf]
    %v549 = vmul.f32 %v547, %v285
    %v550 = vmul.f32 %v548, %v284
    %v553 = vcombine.high %v549, %v549
    %554 = vrot.lane.b32.xlu0 %v549, 111
    %v555 = vpop.permute.xlu0 %554
    %556 = vrot.lane.b32.xlu0 %v553, 111
    %v557 = vpop.permute.xlu0 %556
    %558 = vrot.lane.b32.xlu0 %v550, 111
    %v559 = vpop.permute.xlu0 %558
    %v560 = vsel %vm102, %v555, %v557
    %v561 = vsel %vm102, %v557, %v559
    %564 = vst [vmem:[#allocation4 + $0x80] sm:$0xf] %v560
    %565 = vst [vmem:[#allocation4 + $0x88] sm:$0xf] %v561
    %v566 = vld [vmem:[%s4] sm:$0xf]
    %v567 = vld [vmem:[#allocation4] sm:$0xff]
    %v568 = vld [vmem:[#allocation4 + $0x8] sm:$0xff]
    %v569 = vld [vmem:[#allocation4 + $0x10] sm:$0xff]
    %v570 = vld [vmem:[#allocation4 + $0x18] sm:$0xff]
    %v571 = vld [vmem:[#allocation4 + $0x20] sm:$0xff]
    %v572 = vld [vmem:[#allocation4 + $0x28] sm:$0xff]
    %v573 = vld [vmem:[#allocation4 + $0x30] sm:$0xff]
    %v574 = vld [vmem:[#allocation4 + $0x38] sm:$0xff]
    %v575 = vld [vmem:[#allocation4 + $0x40] sm:$0xff]
    %v576 = vld [vmem:[#allocation4 + $0x48] sm:$0xff]
    %v577 = vld [vmem:[#allocation4 + $0x50] sm:$0xff]
    %v578 = vld [vmem:[#allocation4 + $0x58] sm:$0xff]
    %v579 = vld [vmem:[#allocation4 + $0x60] sm:$0xff]
    %v580 = vld [vmem:[#allocation4 + $0x68] sm:$0xff]
    %v581 = vld [vmem:[#allocation4 + $0x70] sm:$0xff]
    %v582 = vld [vmem:[#allocation4 + $0x78] sm:$0xff]
    %v583 = vld [vmem:[#allocation4 + $0x80] sm:$0xff]
    %v584 = vld [vmem:[#allocation4 + $0x88] sm:$0xff]
    %v585 = vld [vmem:[%s5] sm:$0xf]
    %587 = vset.pattern.permute.xlu0 0
    %588 = vperm.xlu0 %587, %v585
    %v589 = vpop.permute.xlu0 %588
    %v592 = vsel %vm330, %v566, 0
    %594 = vmatprep.subr.mxu0 %v568
    %595 = vmatpush1.msra.mxu0 %v567
    %596 = vmatprep.subr.mxu0 %v570
    %597 = vmatpush1.msra.mxu0 %v569
    %598 = vmatprep.subr.mxu0 %v572
    %599 = vmatpush1.msra.mxu0 %v571
    %600 = vmatprep.subr.mxu0 %v574
    %601 = vmatpush1.msra.mxu0 %v573
    %602 = vmatprep.subr.mxu0 %v576
    %603 = vmatpush1.msra.mxu0 %v575
    %604 = vmatprep.subr.mxu0 %v578
    %605 = vmatpush1.msra.mxu0 %v577
    %606 = vmatprep.subr.mxu0 %v580
    %607 = vmatpush1.msra.mxu0 %v579
    %608 = vmatprep.subr.mxu0 %v582
    %609 = vmatpush1.msra.mxu0 %v581
    %610 = vmatprep.subr.mxu0 %v584
    %611 = vmatpush1.msra.mxu0 %v583
    %612 = vmatprep.subr.mxu0 0.0
    %613 = vmatpush1.msra.mxu0 0.0
    %614 = vmatprep.subr.mxu0 0.0
    %615 = vmatpush1.msra.mxu0 0.0
    %616 = vmatprep.subr.mxu0 0.0
    %617 = vmatpush1.msra.mxu0 0.0
    %618 = vmatprep.subr.mxu0 0.0
    %619 = vmatpush1.msra.mxu0 0.0
    %620 = vmatprep.subr.mxu0 0.0
    %621 = vmatpush1.msra.mxu0 0.0
    %622 = vmatprep.subr.mxu0 0.0
    %623 = vmatpush1.msra.mxu0 0.0
    %624 = vmatprep.subr.mxu0 0.0
    %625 = vmatpush1.msra.mxu0 0.0
    %626 = vmatprep.subr.mxu0 0.0
    %627 = vmatpush1.msra.mxu0 0.0
    %628 = vmatprep.subr.mxu0 0.0
    %629 = vmatpush1.msra.mxu0 0.0
    %630 = vmatprep.subr.mxu0 0.0
    %631 = vmatpush1.msra.mxu0 0.0
    %632 = vmatprep.subr.mxu0 0.0
    %633 = vmatpush1.msra.mxu0 0.0
    %634 = vmatprep.subr.mxu0 0.0
    %635 = vmatpush1.msra.mxu0 0.0
    %636 = vmatprep.subr.mxu0 0.0
    %637 = vmatpush1.msra.mxu0 0.0
    %638 = vmatprep.subr.mxu0 0.0
    %639 = vmatpush1.msra.mxu0 0.0
    %640 = vmatprep.subr.mxu0 0.0
    %641 = vmatpush1.msra.mxu0 0.0
    %642 = vmatprep.subr.mxu0 0.0
    %643 = vmatpush1.msra.mxu0 0.0
    %644 = vmatprep.subr.mxu0 0.0
    %645 = vmatpush1.msra.mxu0 0.0
    %646 = vmatprep.subr.mxu0 0.0
    %647 = vmatpush1.msra.mxu0 0.0
    %648 = vmatprep.subr.mxu0 0.0
    %649 = vmatpush1.msra.mxu0 0.0
    %650 = vmatprep.subr.mxu0 0.0
    %651 = vmatpush1.msra.mxu0 0.0
    %652 = vmatprep.subr.mxu0 0.0
    %653 = vmatpush1.msra.mxu0 0.0
    %654 = vmatprep.subr.mxu0 0.0
    %655 = vmatpush1.msra.mxu0 0.0
    %656 = vmatprep.subr.mxu0 0.0
    %657 = vmatpush1.msra.mxu0 0.0
    %658 = vmatprep.mubr.f32.mxu0 0.0
    %659 = vmatmul.mubr.f32.gmra.mrb[0].mxu0 %v592
    %v660 = vpop.f32.mrb[0].mxu0
    %v661 = vadd.f32 %v589, %v660
    %v662 = vpop.f32.mrb[0].mxu0
    %v663 = vadd.f32 %v589, %v662
    %664 = vdwg.mxu0
    %vm665 = vcmask 1043456
    %v666 = vsel %vm665, %v661, 0.0
    %v667 = vsel %vm665, %v663, 0.0
    %v668 = vadd.f32 %v666, %v667
    %669 = vadd.xlane.f32.xlu0 %v668
    %v670 = vpop.xlane.xlu0 %669
    %v671 = vrcp.pop 256.0
    %v672 = vmul.f32 %v670, %v671
    %vm673 = vcmask 3072
    %674 = vst.msk [vmem:[#allocation5 + $0x1] sm:$0xf] %vm673, %v672
    %v675 = vld [vmem:[#allocation5] sm:$0xf]
    %v676 = vstv %s82
    %v677 = vmul.f32 %v676, %v675
    %v678 = vstv %s83
    %v679 = vmul.f32 %v678, %v672
    %v680 = vadd.f32 %v677, %v679
    %v681 = vld [vmem:[#allocation5 + $0x2] sm:$0xf]
    %v682 = vstv %s84
    %v683 = vmul.f32 %v682, %v681
    %v684 = vadd.f32 %v680, %v683
    %v685 = vxor.u32 %v684, 2147483648
    %v686 = vmul.f32 %v685, 1.442695
    %v687 = vpow.pop %v686
    %v688 = vadd.f32 %v687, 1.0
    %v689 = vrcp.pop %v688
    %v690 = vmul.f32 1.0, %v689
    %692 = vset.pattern.permute.xlu0 0
    %693 = vperm.xlu0 %692, %v690
    %v694 = vpop.permute.xlu0 %693
    %v696 = vmul.f32 %v661, %v694
    %v697 = vmul.f32 %v663, %v694
    %v699 = vcombine.high %v85, %v85
    %v701 = vadd.f32 %v696, %v85
    %v702 = vadd.f32 %v697, %v699
    %v703 = vmax.f32 %v701, 0.0
    %v704 = vmax.f32 %v702, 0.0
    %v707 = vcombine.low %v703, %v704
    %709 = vst [vmem:[#allocation11] sm:$0xff] %v707
    %s710 = scalar_lea.vmem [#allocation6], 8
    %v711 = vld [vmem:[%s710] sm:$0xff]
    %712 = vst [vmem:[#allocation2 + $0x4] sm:$0xff] %v711
    %v713 = vld [vmem:[#allocation2] sm:$0xff]
    %v714 = vld [vmem:[#allocation2 + $0x8] sm:$0xf]
    %v715 = vmul.f32 %v713, %v103
    %v716 = vmul.f32 %v714, %v101
    %v719 = vcombine.high %v715, %v715
    %720 = vrot.lane.b32.xlu0 %v715, 17
    %v721 = vpop.permute.xlu0 %720
    %722 = vrot.lane.b32.xlu0 %v719, 17
    %v723 = vpop.permute.xlu0 %722
    %724 = vrot.lane.b32.xlu0 %v716, 17
    %v725 = vpop.permute.xlu0 %724
    %v726 = vsel %vm117, %v721, %v723
    %v727 = vsel %vm117, %v723, %v725
    %730 = vst [vmem:[#allocation4] sm:$0xf] %v726
    %731 = vst [vmem:[#allocation4 + $0x8] sm:$0xf] %v727
    %v732 = vld [vmem:[#allocation2] sm:$0xff]
    %v733 = vld [vmem:[#allocation2 + $0x8] sm:$0xf]
    %v736 = vcombine.high %v732, %v732
    %737 = vrot.lane.b32.xlu0 %v732, 16
    %v738 = vpop.permute.xlu0 %737
    %739 = vrot.lane.b32.xlu0 %v736, 16
    %v740 = vpop.permute.xlu0 %739
    %741 = vrot.lane.b32.xlu0 %v733, 16
    %v742 = vpop.permute.xlu0 %741
    %v743 = vsel %vm135, %v738, %v740
    %v744 = vsel %vm135, %v740, %v742
    %747 = vst [vmem:[#allocation4 + $0x10] sm:$0xf] %v743
    %748 = vst [vmem:[#allocation4 + $0x18] sm:$0xf] %v744
    %v749 = vld [vmem:[#allocation2] sm:$0xff]
    %v750 = vld [vmem:[#allocation2 + $0x8] sm:$0xf]
    %v751 = vmul.f32 %v749, %v158
    %v752 = vmul.f32 %v750, %v156
    %v755 = vcombine.high %v751, %v751
    %756 = vrot.lane.b32.xlu0 %v751, 15
    %v757 = vpop.permute.xlu0 %756
    %758 = vrot.lane.b32.xlu0 %v755, 15
    %v759 = vpop.permute.xlu0 %758
    %760 = vrot.lane.b32.xlu0 %v752, 15
    %v761 = vpop.permute.xlu0 %760
    %v762 = vsel %vm172, %v757, %v759
    %v763 = vsel %vm172, %v759, %v761
    %766 = vst [vmem:[#allocation4 + $0x20] sm:$0xf] %v762
    %767 = vst [vmem:[#allocation4 + $0x28] sm:$0xf] %v763
    %v768 = vld [vmem:[#allocation2] sm:$0xff]
    %v769 = vld [vmem:[#allocation2 + $0x8] sm:$0xf]
    %v770 = vmul.f32 %v768, %v185
    %v771 = vmul.f32 %v769, %v183
    %v774 = vcombine.high %v770, %v770
    %775 = vrot.lane.b32.xlu0 %v770, 1
    %v776 = vpop.permute.xlu0 %775
    %777 = vrot.lane.b32.xlu0 %v774, 1
    %v778 = vpop.permute.xlu0 %777
    %779 = vrot.lane.b32.xlu0 %v771, 1
    %v780 = vpop.permute.xlu0 %779
    %v781 = vsel %vm199, %v776, %v778
    %v782 = vsel %vm199, %v778, %v780
    %785 = vst [vmem:[#allocation4 + $0x30] sm:$0xf] %v781
    %786 = vst [vmem:[#allocation4 + $0x38] sm:$0xf] %v782
    %v787 = vld [vmem:[#allocation2 + $0x4] sm:$0xff]
    %v789 = vcombine.high %v787, %v787
    %791 = vst [vmem:[#allocation4 + $0x40] sm:$0xf] %v787
    %792 = vst [vmem:[#allocation4 + $0x48] sm:$0xf] %v789
    %v793 = vld [vmem:[#allocation2 + $0x4] sm:$0xff]
    %v794 = vld [vmem:[#allocation2 + $0xc] sm:$0xf]
    %v795 = vmul.f32 %v793, %v217
    %v796 = vmul.f32 %v794, %v216
    %v799 = vcombine.high %v795, %v795
    %800 = vrot.lane.b32.xlu0 %v795, 127
    %v801 = vpop.permute.xlu0 %800
    %802 = vrot.lane.b32.xlu0 %v799, 127
    %v803 = vpop.permute.xlu0 %802
    %804 = vrot.lane.b32.xlu0 %v796, 127
    %v805 = vpop.permute.xlu0 %804
    %v806 = vsel %vm184, %v801, %v803
    %v807 = vsel %vm184, %v803, %v805
    %810 = vst [vmem:[#allocation4 + $0x50] sm:$0xf] %v806
    %811 = vst [vmem:[#allocation4 + $0x58] sm:$0xf] %v807
    %v812 = vld [vmem:[#allocation2 + $0x4] sm:$0xff]
    %v813 = vld [vmem:[#allocation2 + $0xc] sm:$0xf]
    %v814 = vmul.f32 %v812, %v242
    %v815 = vmul.f32 %v813, %v241
    %v818 = vcombine.high %v814, %v814
    %819 = vrot.lane.b32.xlu0 %v814, 113
    %v820 = vpop.permute.xlu0 %819
    %821 = vrot.lane.b32.xlu0 %v818, 113
    %v822 = vpop.permute.xlu0 %821
    %823 = vrot.lane.b32.xlu0 %v815, 113
    %v824 = vpop.permute.xlu0 %823
    %v825 = vsel %vm157, %v820, %v822
    %v826 = vsel %vm157, %v822, %v824
    %829 = vst [vmem:[#allocation4 + $0x60] sm:$0xf] %v825
    %830 = vst [vmem:[#allocation4 + $0x68] sm:$0xf] %v826
    %v831 = vld [vmem:[#allocation2 + $0x4] sm:$0xff]
    %v832 = vld [vmem:[#allocation2 + $0xc] sm:$0xf]
    %v835 = vcombine.high %v831, %v831
    %836 = vrot.lane.b32.xlu0 %v831, 112
    %v837 = vpop.permute.xlu0 %836
    %838 = vrot.lane.b32.xlu0 %v835, 112
    %v839 = vpop.permute.xlu0 %838
    %840 = vrot.lane.b32.xlu0 %v832, 112
    %v841 = vpop.permute.xlu0 %840
    %v842 = vsel %vm273, %v837, %v839
    %v843 = vsel %vm273, %v839, %v841
    %846 = vst [vmem:[#allocation4 + $0x70] sm:$0xf] %v842
    %847 = vst [vmem:[#allocation4 + $0x78] sm:$0xf] %v843
    %v848 = vld [vmem:[#allocation2 + $0x4] sm:$0xff]
    %v849 = vld [vmem:[#allocation2 + $0xc] sm:$0xf]
    %v850 = vmul.f32 %v848, %v285
    %v851 = vmul.f32 %v849, %v284
    %v854 = vcombine.high %v850, %v850
    %855 = vrot.lane.b32.xlu0 %v850, 111
    %v856 = vpop.permute.xlu0 %855
    %857 = vrot.lane.b32.xlu0 %v854, 111
    %v858 = vpop.permute.xlu0 %857
    %859 = vrot.lane.b32.xlu0 %v851, 111
    %v860 = vpop.permute.xlu0 %859
    %v861 = vsel %vm102, %v856, %v858
    %v862 = vsel %vm102, %v858, %v860
    %865 = vst [vmem:[#allocation4 + $0x80] sm:$0xf] %v861
    %866 = vst [vmem:[#allocation4 + $0x88] sm:$0xf] %v862
    %v867 = vld [vmem:[%s2] sm:$0xf]
    %v868 = vld [vmem:[#allocation4] sm:$0xff]
    %v869 = vld [vmem:[#allocation4 + $0x8] sm:$0xff]
    %v870 = vld [vmem:[#allocation4 + $0x10] sm:$0xff]
    %v871 = vld [vmem:[#allocation4 + $0x18] sm:$0xff]
    %v872 = vld [vmem:[#allocation4 + $0x20] sm:$0xff]
    %v873 = vld [vmem:[#allocation4 + $0x28] sm:$0xff]
    %v874 = vld [vmem:[#allocation4 + $0x30] sm:$0xff]
    %v875 = vld [vmem:[#allocation4 + $0x38] sm:$0xff]
    %v876 = vld [vmem:[#allocation4 + $0x40] sm:$0xff]
    %v877 = vld [vmem:[#allocation4 + $0x48] sm:$0xff]
    %v878 = vld [vmem:[#allocation4 + $0x50] sm:$0xff]
    %v879 = vld [vmem:[#allocation4 + $0x58] sm:$0xff]
    %v880 = vld [vmem:[#allocation4 + $0x60] sm:$0xff]
    %v881 = vld [vmem:[#allocation4 + $0x68] sm:$0xff]
    %v882 = vld [vmem:[#allocation4 + $0x70] sm:$0xff]
    %v883 = vld [vmem:[#allocation4 + $0x78] sm:$0xff]
    %v884 = vld [vmem:[#allocation4 + $0x80] sm:$0xff]
    %v885 = vld [vmem:[#allocation4 + $0x88] sm:$0xff]
    %v886 = vld [vmem:[%s3] sm:$0xf]
    %888 = vset.pattern.permute.xlu0 0
    %889 = vperm.xlu0 %888, %v886
    %v890 = vpop.permute.xlu0 %889
    %v893 = vsel %vm330, %v867, 0
    %895 = vmatprep.subr.mxu0 %v869
    %896 = vmatpush1.msra.mxu0 %v868
    %897 = vmatprep.subr.mxu0 %v871
    %898 = vmatpush1.msra.mxu0 %v870
    %899 = vmatprep.subr.mxu0 %v873
    %900 = vmatpush1.msra.mxu0 %v872
    %901 = vmatprep.subr.mxu0 %v875
    %902 = vmatpush1.msra.mxu0 %v874
    %903 = vmatprep.subr.mxu0 %v877
    %904 = vmatpush1.msra.mxu0 %v876
    %905 = vmatprep.subr.mxu0 %v879
    %906 = vmatpush1.msra.mxu0 %v878
    %907 = vmatprep.subr.mxu0 %v881
    %908 = vmatpush1.msra.mxu0 %v880
    %909 = vmatprep.subr.mxu0 %v883
    %910 = vmatpush1.msra.mxu0 %v882
    %911 = vmatprep.subr.mxu0 %v885
    %912 = vmatpush1.msra.mxu0 %v884
    %913 = vmatprep.subr.mxu0 0.0
    %914 = vmatpush1.msra.mxu0 0.0
    %915 = vmatprep.subr.mxu0 0.0
    %916 = vmatpush1.msra.mxu0 0.0
    %917 = vmatprep.subr.mxu0 0.0
    %918 = vmatpush1.msra.mxu0 0.0
    %919 = vmatprep.subr.mxu0 0.0
    %920 = vmatpush1.msra.mxu0 0.0
    %921 = vmatprep.subr.mxu0 0.0
    %922 = vmatpush1.msra.mxu0 0.0
    %923 = vmatprep.subr.mxu0 0.0
    %924 = vmatpush1.msra.mxu0 0.0
    %925 = vmatprep.subr.mxu0 0.0
    %926 = vmatpush1.msra.mxu0 0.0
    %927 = vmatprep.subr.mxu0 0.0
    %928 = vmatpush1.msra.mxu0 0.0
    %929 = vmatprep.subr.mxu0 0.0
    %930 = vmatpush1.msra.mxu0 0.0
    %931 = vmatprep.subr.mxu0 0.0
    %932 = vmatpush1.msra.mxu0 0.0
    %933 = vmatprep.subr.mxu0 0.0
    %934 = vmatpush1.msra.mxu0 0.0
    %935 = vmatprep.subr.mxu0 0.0
    %936 = vmatpush1.msra.mxu0 0.0
    %937 = vmatprep.subr.mxu0 0.0
    %938 = vmatpush1.msra.mxu0 0.0
    %939 = vmatprep.subr.mxu0 0.0
    %940 = vmatpush1.msra.mxu0 0.0
    %941 = vmatprep.subr.mxu0 0.0
    %942 = vmatpush1.msra.mxu0 0.0
    %943 = vmatprep.subr.mxu0 0.0
    %944 = vmatpush1.msra.mxu0 0.0
    %945 = vmatprep.subr.mxu0 0.0
    %946 = vmatpush1.msra.mxu0 0.0
    %947 = vmatprep.subr.mxu0 0.0
    %948 = vmatpush1.msra.mxu0 0.0
    %949 = vmatprep.subr.mxu0 0.0
    %950 = vmatpush1.msra.mxu0 0.0
    %951 = vmatprep.subr.mxu0 0.0
    %952 = vmatpush1.msra.mxu0 0.0
    %953 = vmatprep.subr.mxu0 0.0
    %954 = vmatpush1.msra.mxu0 0.0
    %955 = vmatprep.subr.mxu0 0.0
    %956 = vmatpush1.msra.mxu0 0.0
    %957 = vmatprep.subr.mxu0 0.0
    %958 = vmatpush1.msra.mxu0 0.0
    %959 = vmatprep.mubr.f32.mxu0 0.0
    %960 = vmatmul.mubr.f32.gmra.mrb[0].mxu0 %v893
    %v961 = vpop.f32.mrb[0].mxu0
    %v962 = vadd.f32 %v890, %v961
    %v963 = vpop.f32.mrb[0].mxu0
    %v964 = vadd.f32 %v890, %v963
    %965 = vdwg.mxu0
    %v966 = vmax.f32 %v962, 0.0
    %v967 = vmax.f32 %v964, 0.0
    %v970 = vcombine.low %v966, %v967
    %972 = vst [vmem:[#allocation3 + $0x4] sm:$0xff] %v970
    %v973 = vld [vmem:[#allocation3] sm:$0xff]
    %v974 = vld [vmem:[#allocation3 + $0x8] sm:$0xf]
    %v975 = vmul.f32 %v973, %v103
    %v976 = vmul.f32 %v974, %v101
    %v979 = vcombine.high %v975, %v975
    %980 = vrot.lane.b32.xlu0 %v975, 17
    %v981 = vpop.permute.xlu0 %980
    %982 = vrot.lane.b32.xlu0 %v979, 17
    %v983 = vpop.permute.xlu0 %982
    %984 = vrot.lane.b32.xlu0 %v976, 17
    %v985 = vpop.permute.xlu0 %984
    %v986 = vsel %vm117, %v981, %v983
    %v987 = vsel %vm117, %v983, %v985
    %990 = vst [vmem:[#allocation4] sm:$0xf] %v986
    %991 = vst [vmem:[#allocation4 + $0x8] sm:$0xf] %v987
    %v992 = vld [vmem:[#allocation3] sm:$0xff]
    %v993 = vld [vmem:[#allocation3 + $0x8] sm:$0xf]
    %v996 = vcombine.high %v992, %v992
    %997 = vrot.lane.b32.xlu0 %v992, 16
    %v998 = vpop.permute.xlu0 %997
    %999 = vrot.lane.b32.xlu0 %v996, 16
    %v1000 = vpop.permute.xlu0 %999
    %1001 = vrot.lane.b32.xlu0 %v993, 16
    %v1002 = vpop.permute.xlu0 %1001
    %v1003 = vsel %vm135, %v998, %v1000
    %v1004 = vsel %vm135, %v1000, %v1002
    %1007 = vst [vmem:[#allocation4 + $0x10] sm:$0xf] %v1003
    %1008 = vst [vmem:[#allocation4 + $0x18] sm:$0xf] %v1004
    %v1009 = vld [vmem:[#allocation3] sm:$0xff]
    %v1010 = vld [vmem:[#allocation3 + $0x8] sm:$0xf]
    %v1011 = vmul.f32 %v1009, %v158
    %v1012 = vmul.f32 %v1010, %v156
    %v1015 = vcombine.high %v1011, %v1011
    %1016 = vrot.lane.b32.xlu0 %v1011, 15
    %v1017 = vpop.permute.xlu0 %1016
    %1018 = vrot.lane.b32.xlu0 %v1015, 15
    %v1019 = vpop.permute.xlu0 %1018
    %1020 = vrot.lane.b32.xlu0 %v1012, 15
    %v1021 = vpop.permute.xlu0 %1020
    %v1022 = vsel %vm172, %v1017, %v1019
    %v1023 = vsel %vm172, %v1019, %v1021
    %1026 = vst [vmem:[#allocation4 + $0x20] sm:$0xf] %v1022
    %1027 = vst [vmem:[#allocation4 + $0x28] sm:$0xf] %v1023
    %v1028 = vld [vmem:[#allocation3] sm:$0xff]
    %v1029 = vld [vmem:[#allocation3 + $0x8] sm:$0xf]
    %v1030 = vmul.f32 %v1028, %v185
    %v1031 = vmul.f32 %v1029, %v183
    %v1034 = vcombine.high %v1030, %v1030
    %1035 = vrot.lane.b32.xlu0 %v1030, 1
    %v1036 = vpop.permute.xlu0 %1035
    %1037 = vrot.lane.b32.xlu0 %v1034, 1
    %v1038 = vpop.permute.xlu0 %1037
    %1039 = vrot.lane.b32.xlu0 %v1031, 1
    %v1040 = vpop.permute.xlu0 %1039
    %v1041 = vsel %vm199, %v1036, %v1038
    %v1042 = vsel %vm199, %v1038, %v1040
    %1045 = vst [vmem:[#allocation4 + $0x30] sm:$0xf] %v1041
    %1046 = vst [vmem:[#allocation4 + $0x38] sm:$0xf] %v1042
    %v1047 = vld [vmem:[#allocation3 + $0x4] sm:$0xff]
    %v1049 = vcombine.high %v1047, %v1047
    %1051 = vst [vmem:[#allocation4 + $0x40] sm:$0xf] %v1047
    %1052 = vst [vmem:[#allocation4 + $0x48] sm:$0xf] %v1049
    %v1053 = vld [vmem:[#allocation3 + $0x4] sm:$0xff]
    %v1054 = vld [vmem:[#allocation3 + $0xc] sm:$0xf]
    %v1055 = vmul.f32 %v1053, %v217
    %v1056 = vmul.f32 %v1054, %v216
    %v1059 = vcombine.high %v1055, %v1055
    %1060 = vrot.lane.b32.xlu0 %v1055, 127
    %v1061 = vpop.permute.xlu0 %1060
    %1062 = vrot.lane.b32.xlu0 %v1059, 127
    %v1063 = vpop.permute.xlu0 %1062
    %1064 = vrot.lane.b32.xlu0 %v1056, 127
    %v1065 = vpop.permute.xlu0 %1064
    %v1066 = vsel %vm184, %v1061, %v1063
    %v1067 = vsel %vm184, %v1063, %v1065
    %1070 = vst [vmem:[#allocation4 + $0x50] sm:$0xf] %v1066
    %1071 = vst [vmem:[#allocation4 + $0x58] sm:$0xf] %v1067
    %v1072 = vld [vmem:[#allocation3 + $0x4] sm:$0xff]
    %v1073 = vld [vmem:[#allocation3 + $0xc] sm:$0xf]
    %v1074 = vmul.f32 %v1072, %v242
    %v1075 = vmul.f32 %v1073, %v241
    %v1078 = vcombine.high %v1074, %v1074
    %1079 = vrot.lane.b32.xlu0 %v1074, 113
    %v1080 = vpop.permute.xlu0 %1079
    %1081 = vrot.lane.b32.xlu0 %v1078, 113
    %v1082 = vpop.permute.xlu0 %1081
    %1083 = vrot.lane.b32.xlu0 %v1075, 113
    %v1084 = vpop.permute.xlu0 %1083
    %v1085 = vsel %vm157, %v1080, %v1082
    %v1086 = vsel %vm157, %v1082, %v1084
    %1089 = vst [vmem:[#allocation4 + $0x60] sm:$0xf] %v1085
    %1090 = vst [vmem:[#allocation4 + $0x68] sm:$0xf] %v1086
    %v1091 = vld [vmem:[#allocation3 + $0x4] sm:$0xff]
    %v1092 = vld [vmem:[#allocation3 + $0xc] sm:$0xf]
    %v1095 = vcombine.high %v1091, %v1091
    %1096 = vrot.lane.b32.xlu0 %v1091, 112
    %v1097 = vpop.permute.xlu0 %1096
    %1098 = vrot.lane.b32.xlu0 %v1095, 112
    %v1099 = vpop.permute.xlu0 %1098
    %1100 = vrot.lane.b32.xlu0 %v1092, 112
    %v1101 = vpop.permute.xlu0 %1100
    %v1102 = vsel %vm273, %v1097, %v1099
    %v1103 = vsel %vm273, %v1099, %v1101
    %1106 = vst [vmem:[#allocation4 + $0x70] sm:$0xf] %v1102
    %1107 = vst [vmem:[#allocation4 + $0x78] sm:$0xf] %v1103
    %v1108 = vld [vmem:[#allocation3 + $0x4] sm:$0xff]
    %v1109 = vld [vmem:[#allocation3 + $0xc] sm:$0xf]
    %v1110 = vmul.f32 %v1108, %v285
    %v1111 = vmul.f32 %v1109, %v284
    %v1114 = vcombine.high %v1110, %v1110
    %1115 = vrot.lane.b32.xlu0 %v1110, 111
    %v1116 = vpop.permute.xlu0 %1115
    %1117 = vrot.lane.b32.xlu0 %v1114, 111
    %v1118 = vpop.permute.xlu0 %1117
    %1119 = vrot.lane.b32.xlu0 %v1111, 111
    %v1120 = vpop.permute.xlu0 %1119
    %v1121 = vsel %vm102, %v1116, %v1118
    %v1122 = vsel %vm102, %v1118, %v1120
    %1125 = vst [vmem:[#allocation4 + $0x80] sm:$0xf] %v1121
    %1126 = vst [vmem:[#allocation4 + $0x88] sm:$0xf] %v1122
    %v1127 = vld [vmem:[%s4] sm:$0xf]
    %v1128 = vld [vmem:[#allocation4] sm:$0xff]
    %v1129 = vld [vmem:[#allocation4 + $0x8] sm:$0xff]
    %v1130 = vld [vmem:[#allocation4 + $0x10] sm:$0xff]
    %v1131 = vld [vmem:[#allocation4 + $0x18] sm:$0xff]
    %v1132 = vld [vmem:[#allocation4 + $0x20] sm:$0xff]
    %v1133 = vld [vmem:[#allocation4 + $0x28] sm:$0xff]
    %v1134 = vld [vmem:[#allocation4 + $0x30] sm:$0xff]
    %v1135 = vld [vmem:[#allocation4 + $0x38] sm:$0xff]
    %v1136 = vld [vmem:[#allocation4 + $0x40] sm:$0xff]
    %v1137 = vld [vmem:[#allocation4 + $0x48] sm:$0xff]
    %v1138 = vld [vmem:[#allocation4 + $0x50] sm:$0xff]
    %v1139 = vld [vmem:[#allocation4 + $0x58] sm:$0xff]
    %v1140 = vld [vmem:[#allocation4 + $0x60] sm:$0xff]
    %v1141 = vld [vmem:[#allocation4 + $0x68] sm:$0xff]
    %v1142 = vld [vmem:[#allocation4 + $0x70] sm:$0xff]
    %v1143 = vld [vmem:[#allocation4 + $0x78] sm:$0xff]
    %v1144 = vld [vmem:[#allocation4 + $0x80] sm:$0xff]
    %v1145 = vld [vmem:[#allocation4 + $0x88] sm:$0xff]
    %v1146 = vld [vmem:[%s5] sm:$0xf]
    %1148 = vset.pattern.permute.xlu0 0
    %1149 = vperm.xlu0 %1148, %v1146
    %v1150 = vpop.permute.xlu0 %1149
    %v1153 = vsel %vm330, %v1127, 0
    %1155 = vmatprep.subr.mxu0 %v1129
    %1156 = vmatpush1.msra.mxu0 %v1128
    %1157 = vmatprep.subr.mxu0 %v1131
    %1158 = vmatpush1.msra.mxu0 %v1130
    %1159 = vmatprep.subr.mxu0 %v1133
    %1160 = vmatpush1.msra.mxu0 %v1132
    %1161 = vmatprep.subr.mxu0 %v1135
    %1162 = vmatpush1.msra.mxu0 %v1134
    %1163 = vmatprep.subr.mxu0 %v1137
    %1164 = vmatpush1.msra.mxu0 %v1136
    %1165 = vmatprep.subr.mxu0 %v1139
    %1166 = vmatpush1.msra.mxu0 %v1138
    %1167 = vmatprep.subr.mxu0 %v1141
    %1168 = vmatpush1.msra.mxu0 %v1140
    %1169 = vmatprep.subr.mxu0 %v1143
    %1170 = vmatpush1.msra.mxu0 %v1142
    %1171 = vmatprep.subr.mxu0 %v1145
    %1172 = vmatpush1.msra.mxu0 %v1144
    %1173 = vmatprep.subr.mxu0 0.0
    %1174 = vmatpush1.msra.mxu0 0.0
    %1175 = vmatprep.subr.mxu0 0.0
    %1176 = vmatpush1.msra.mxu0 0.0
    %1177 = vmatprep.subr.mxu0 0.0
    %1178 = vmatpush1.msra.mxu0 0.0
    %1179 = vmatprep.subr.mxu0 0.0
    %1180 = vmatpush1.msra.mxu0 0.0
    %1181 = vmatprep.subr.mxu0 0.0
    %1182 = vmatpush1.msra.mxu0 0.0
    %1183 = vmatprep.subr.mxu0 0.0
    %1184 = vmatpush1.msra.mxu0 0.0
    %1185 = vmatprep.subr.mxu0 0.0
    %1186 = vmatpush1.msra.mxu0 0.0
    %1187 = vmatprep.subr.mxu0 0.0
    %1188 = vmatpush1.msra.mxu0 0.0
    %1189 = vmatprep.subr.mxu0 0.0
    %1190 = vmatpush1.msra.mxu0 0.0
    %1191 = vmatprep.subr.mxu0 0.0
    %1192 = vmatpush1.msra.mxu0 0.0
    %1193 = vmatprep.subr.mxu0 0.0
    %1194 = vmatpush1.msra.mxu0 0.0
    %1195 = vmatprep.subr.mxu0 0.0
    %1196 = vmatpush1.msra.mxu0 0.0
    %1197 = vmatprep.subr.mxu0 0.0
    %1198 = vmatpush1.msra.mxu0 0.0
    %1199 = vmatprep.subr.mxu0 0.0
    %1200 = vmatpush1.msra.mxu0 0.0
    %1201 = vmatprep.subr.mxu0 0.0
    %1202 = vmatpush1.msra.mxu0 0.0
    %1203 = vmatprep.subr.mxu0 0.0
    %1204 = vmatpush1.msra.mxu0 0.0
    %1205 = vmatprep.subr.mxu0 0.0
    %1206 = vmatpush1.msra.mxu0 0.0
    %1207 = vmatprep.subr.mxu0 0.0
    %1208 = vmatpush1.msra.mxu0 0.0
    %1209 = vmatprep.subr.mxu0 0.0
    %1210 = vmatpush1.msra.mxu0 0.0
    %1211 = vmatprep.subr.mxu0 0.0
    %1212 = vmatpush1.msra.mxu0 0.0
    %1213 = vmatprep.subr.mxu0 0.0
    %1214 = vmatpush1.msra.mxu0 0.0
    %1215 = vmatprep.subr.mxu0 0.0
    %1216 = vmatpush1.msra.mxu0 0.0
    %1217 = vmatprep.subr.mxu0 0.0
    %1218 = vmatpush1.msra.mxu0 0.0
    %1219 = vmatprep.mubr.f32.mxu0 0.0
    %1220 = vmatmul.mubr.f32.gmra.mrb[0].mxu0 %v1153
    %v1221 = vpop.f32.mrb[0].mxu0
    %v1222 = vadd.f32 %v1150, %v1221
    %v1223 = vpop.f32.mrb[0].mxu0
    %v1224 = vadd.f32 %v1150, %v1223
    %1225 = vdwg.mxu0
    %v1226 = vsel %vm665, %v1222, 0.0
    %v1227 = vsel %vm665, %v1224, 0.0
    %v1228 = vadd.f32 %v1226, %v1227
    %1229 = vadd.xlane.f32.xlu0 %v1228
    %v1230 = vpop.xlane.xlu0 %1229
    %v1231 = vmul.f32 %v1230, %v671
    %1232 = vst.msk [vmem:[#allocation5 + $0x1] sm:$0xf] %vm673, %v1231
    %v1233 = vld [vmem:[#allocation5] sm:$0xf]
    %v1234 = vmul.f32 %v676, %v1233
    %v1235 = vmul.f32 %v678, %v1231
    %v1236 = vadd.f32 %v1234, %v1235
    %v1237 = vld [vmem:[#allocation5 + $0x2] sm:$0xf]
    %v1238 = vmul.f32 %v682, %v1237
    %v1239 = vadd.f32 %v1236, %v1238
    %v1240 = vxor.u32 %v1239, 2147483648
    %v1241 = vmul.f32 %v1240, 1.442695
    %v1242 = vpow.pop %v1241
    %v1243 = vadd.f32 %v1242, 1.0
    %v1244 = vrcp.pop %v1243
    %v1245 = vmul.f32 1.0, %v1244
    %1247 = vset.pattern.permute.xlu0 0
    %1248 = vperm.xlu0 %1247, %v1245
    %v1249 = vpop.permute.xlu0 %1248
    %v1251 = vmul.f32 %v1222, %v1249
    %v1252 = vmul.f32 %v1224, %v1249
    %v1254 = vcombine.high %v711, %v711
    %v1256 = vadd.f32 %v1251, %v711
    %v1257 = vadd.f32 %v1252, %v1254
    %v1258 = vmax.f32 %v1256, 0.0
    %v1259 = vmax.f32 %v1257, 0.0
    %v1262 = vcombine.low %v1258, %v1259
    %s1264 = scalar_lea.vmem [#allocation11], 8
    %1265 = vst [vmem:[%s1264] sm:$0xff] %v1262
    // Predicated region
    $region38: #{tpu_custom_call.1} parent=1 // pred_check
      _
    $region39: #{tpu_custom_call.1} parent=1 // pred_check_branch
      %1267 = sbr.rel (0) target = $region41
    $region40: #{tpu_custom_call.1} parent=1 // pred_region
      %s1269 = ssub.s32 256, 256
      %1270 = vsyncadd [#allocation8], %s1269
      %s1271 = sshll.u32 [#allocation11], 4
      %s1272 = int_to_ptr.vmem [resolvable:$true] %s1271
      %1277 = dma.vmem_to_hbm [thread:$0]  %s1272, 256, %s7, [#allocation8], 128, 128, 8
    $region41: #{tpu_custom_call.1} parent=1 // pred_fallthru
      _
    // Predicated region
    $region42: #{tpu_custom_call.1} parent=1 // pred_check
      _
    $region43: #{tpu_custom_call.1} parent=1 // pred_check_branch
      %1279 = sbr.rel (0) target = $region45
    $region44: #{tpu_custom_call.1} parent=1 // pred_region
      %1280 = dma.done [#allocation8], 256
    $region45: #{tpu_custom_call.1} parent=1 // pred_fallthru
      _
    %1281 = vsyncpa [#allocation7], 1
    %1282 = vsyncpa [#allocation8], 1
    %1283 = vsyncpa [#allocation9], 1

</llo_original>
